<compile_context>
chip_gen: v6e
topology: v6e:2x2x1
jax: 0.10.0
libtpu: 0.0.40
codegen_flags: <defaults>
</compile_context>

<pallas_src>
import functools

import jax
import jax.numpy as jnp
from jax.experimental import pallas as pl
from jax.experimental.pallas import tpu as pltpu


# ----------------------------------------------------------------------------
# Pallas kernel: ONE encoder layer for ONE batch element per grid step.
# Grid = (batch, layer); activation resident across the layer axis.
# ----------------------------------------------------------------------------
def _layer_kernel(x_ref, mask_ref,
                  wq_ref, bq_ref, wk_ref, bk_ref, wv_ref, bv_ref,
                  wo_ref, bo_ref, w1_ref, b1_ref, w2_ref, b2_ref,
                  g1_ref, be1_ref, g2_ref, be2_ref,
                  out_ref,
                  q_s, k_s, v_s, ctx_s,
                  *, nhead, eps):
    layer = pl.program_id(1)

    # Initialize the resident activation from the input on the first layer.
    @pl.when(layer == 0)
    def _():
        out_ref[...] = x_ref[...]

    h = out_ref[...]                       # (Tp, D) f32 resident activation
    D = h.shape[-1]
    hd = D // nhead
    hb = h.astype(jnp.bfloat16)
    mask = mask_ref[...]                   # (1, Tp) f32 additive key mask

    # ---- Q / K / V projections (bf16 operands, f32 accumulation).
    #      Wq / bq were pre-scaled by 1/sqrt(hd) in the wrapper.
    q_s[...] = (jnp.dot(hb, wq_ref[...], preferred_element_type=jnp.float32)
                + bq_ref[...]).astype(jnp.bfloat16)
    k_s[...] = (jnp.dot(hb, wk_ref[...], preferred_element_type=jnp.float32)
                + bk_ref[...]).astype(jnp.bfloat16)
    v_s[...] = (jnp.dot(hb, wv_ref[...], preferred_element_type=jnp.float32)
                + bv_ref[...]).astype(jnp.bfloat16)

    # ---- per-head attention; static ref slices in, direct scratch stores out.
    for hh in range(nhead):
        c0 = hh * hd
        qh = q_s[:, c0:c0 + hd]            # (Tp, hd) bf16
        kh = k_s[:, c0:c0 + hd]
        vh = v_s[:, c0:c0 + hd]
        # q @ k^T (contraction on dim 1, no explicit transpose), f32 scores.
        s = jax.lax.dot_general(qh, kh, (((1,), (1,)), ((), ())),
                                preferred_element_type=jnp.float32)
        s = s + mask                        # additive key mask (f32)
        s = s - jnp.max(s, axis=-1, keepdims=True)
        e = jnp.exp(s)
        inv = pl.reciprocal(jnp.sum(e, axis=-1, keepdims=True), approx=True)
        p = (e * inv).astype(jnp.bfloat16)
        ctx_s[:, c0:c0 + hd] = jnp.dot(
            p, vh, preferred_element_type=jnp.float32).astype(jnp.bfloat16)

    # ---- output projection (single (Tp, D) @ (D, D) matmul on bf16 ctx)
    attn = jnp.dot(ctx_s[...], wo_ref[...],
                   preferred_element_type=jnp.float32) + bo_ref[...]

    # ---- residual + LayerNorm1 (post-norm; dropout = identity in eval), f32
    y = h + attn
    mu = jnp.mean(y, axis=-1, keepdims=True)
    var = jnp.mean((y - mu) ** 2, axis=-1, keepdims=True)
    y = (y - mu) * jax.lax.rsqrt(var + eps) * g1_ref[...] + be1_ref[...]

    # ---- feed-forward (relu), bf16 matmul operands, f32 accumulation
    yb = y.astype(jnp.bfloat16)
    ff = jnp.maximum(
        jnp.dot(yb, w1_ref[...], preferred_element_type=jnp.float32)
        + b1_ref[...], 0.0)
    f = jnp.dot(ff.astype(jnp.bfloat16), w2_ref[...],
                preferred_element_type=jnp.float32) + b2_ref[...]

    # ---- residual + LayerNorm2, write back into the resident activation
    z = y + f
    mu2 = jnp.mean(z, axis=-1, keepdims=True)
    var2 = jnp.mean((z - mu2) ** 2, axis=-1, keepdims=True)
    out_ref[...] = (z - mu2) * jax.lax.rsqrt(var2 + eps) * g2_ref[...] + be2_ref[...]


# ----------------------------------------------------------------------------
# Module forward (XLA-side glue; the whole encoder stack runs in one Pallas call
# with a (batch, layer) grid).
# ----------------------------------------------------------------------------
def transformer_with_token_forward(params, x, src_key_padding_mask, nhead):
    """x: (S, B, D) float32; src_key_padding_mask: (B, S) bool (True = pad)."""
    S, B, D = x.shape
    L = len(params["layers"])
    F = params["layers"][0]["w1"].shape[0]
    T = S + 1
    Tp = ((T + 7) // 8) * 8                                  # sublane-aligned
    hd = D // nhead
    scale = 1.0 / float(hd) ** 0.5

    # -- prepend token, pad sequence: (B, Tp, D)
    token = jnp.broadcast_to(params["token"], (1, B, D)).astype(jnp.float32)
    xt = jnp.concatenate([token, x.astype(jnp.float32)], axis=0)      # (T,B,D)
    xb = jnp.transpose(xt, (1, 0, 2))                                 # (B,T,D)
    xb = jnp.pad(xb, ((0, 0), (0, Tp - T), (0, 0)))                   # (B,Tp,D)

    # -- additive key mask (token unmasked; padding-to-Tp masked): (B, 1, Tp)
    pad = jnp.concatenate([jnp.zeros((B, 1), bool), src_key_padding_mask], axis=1)
    pad = jnp.pad(pad, ((0, 0), (0, Tp - T)), constant_values=True)
    add_mask = jnp.where(pad, jnp.float32(-1e30), jnp.float32(0.0))[:, None, :]

    # -- stack per-layer weights, split QKV, pre-transpose, fold softmax scale
    #    into Wq/bq, cast matmul weights to bf16 (biases / LN params stay f32).
    def stack(name):
        return jnp.stack([lp[name] for lp in params["layers"]])

    wqkv = stack("wqkv")                                     # (L, 3D, D)
    bqkv = stack("bqkv")                                     # (L, 3D)
    wq = jnp.transpose(wqkv[:, 0:D, :], (0, 2, 1)) * scale   # (L, D, D)
    wk = jnp.transpose(wqkv[:, D:2 * D, :], (0, 2, 1))
    wv = jnp.transpose(wqkv[:, 2 * D:3 * D, :], (0, 2, 1))
    bq = (bqkv[:, 0:D] * scale)[:, None, :]                  # (L, 1, D)
    bk = bqkv[:, D:2 * D][:, None, :]
    bv = bqkv[:, 2 * D:3 * D][:, None, :]
    wo = jnp.transpose(stack("wo"), (0, 2, 1))               # (L, D, D)
    bo = stack("bo")[:, None, :]
    w1 = jnp.transpose(stack("w1"), (0, 2, 1))               # (L, D, F)
    b1 = stack("b1")[:, None, :]
    w2 = jnp.transpose(stack("w2"), (0, 2, 1))               # (L, F, D)
    b2 = stack("b2")[:, None, :]
    g1 = stack("g1")[:, None, :]
    be1 = stack("be1")[:, None, :]
    g2 = stack("g2")[:, None, :]
    be2 = stack("be2")[:, None, :]

    bf = jnp.bfloat16
    wq, wk, wv, wo, w1, w2 = (w.astype(bf) for w in (wq, wk, wv, wo, w1, w2))

    kern = functools.partial(_layer_kernel, nhead=nhead, eps=1e-5)

    def wspec(*dims):        # per-layer weight block, streamed along the grid
        return pl.BlockSpec((None,) + dims, lambda b, l: (l, 0, 0))

    def aspec(*dims):        # per-batch activation block, resident across layers
        return pl.BlockSpec((None,) + dims, lambda b, l: (b, 0, 0))

    out = pl.pallas_call(
        kern,
        out_shape=jax.ShapeDtypeStruct((B, Tp, D), jnp.float32),
        grid=(B, L),
        in_specs=[
            aspec(Tp, D),                      # activations (one batch element)
            aspec(1, Tp),                      # additive key mask
            wspec(D, D), wspec(1, D),          # Wq^T (pre-scaled), bq
            wspec(D, D), wspec(1, D),          # Wk^T, bk
            wspec(D, D), wspec(1, D),          # Wv^T, bv
            wspec(D, D), wspec(1, D),          # Wo^T, bo
            wspec(D, F), wspec(1, F),          # W1^T, b1
            wspec(F, D), wspec(1, D),          # W2^T, b2
            wspec(1, D), wspec(1, D),          # norm1 gamma, beta
            wspec(1, D), wspec(1, D),          # norm2 gamma, beta
        ],
        out_specs=aspec(Tp, D),
        scratch_shapes=[
            pltpu.VMEM((Tp, D), bf),           # q
            pltpu.VMEM((Tp, D), bf),           # k
            pltpu.VMEM((Tp, D), bf),           # v
            pltpu.VMEM((Tp, D), bf),           # concatenated head contexts
        ],
        compiler_params=pltpu.CompilerParams(
            dimension_semantics=("parallel", "arbitrary"),
            # explicit, v7x-safe (64 MiB physical) VMEM budget with headroom
            vmem_limit_bytes=48 * 1024 * 1024,
        ),
    )(xb, add_mask, wq, bq, wk, bk, wv, bv, wo, bo,
      w1, b1, w2, b2, g1, be1, g2, be2)

    out = out[:, :T, :]                        # drop padded rows
    return jnp.transpose(out, (1, 0, 2))       # (S+1, B, D)


# ----------------------------------------------------------------------------
# Pure-JAX f32 reference (for a correctness smoke test).
# ----------------------------------------------------------------------------
def _ref_forward(params, x, src_key_padding_mask, nhead):
    hi = jax.lax.Precision.HIGHEST
    S, B, D = x.shape
    token = jnp.broadcast_to(params["token"], (1, B, D))
    xt = jnp.concatenate([token, x], axis=0)
    pad = jnp.concatenate([jnp.zeros((B, 1), bool), src_key_padding_mask], axis=1)
    add_mask = jnp.where(pad, -1e30, 0.0)[:, None, :]                   # (B,1,T)
    xb = jnp.transpose(xt, (1, 0, 2)).astype(jnp.float32)
    for p in params["layers"]:
        T = xb.shape[1]
        hd = D // nhead
        qkv = jnp.einsum("btd,ed->bte", xb, p["wqkv"], precision=hi) + p["bqkv"]
        q, k, v = qkv[..., :D], qkv[..., D:2 * D], qkv[..., 2 * D:]
        q = q.reshape(B, T, nhead, hd)
        k = k.reshape(B, T, nhead, hd)
        v = v.reshape(B, T, nhead, hd)
        s = jnp.einsum("bqhd,bkhd->bhqk", q, k, precision=hi) / hd ** 0.5
        s = s + add_mask[:, :, None, :]
        w = jax.nn.softmax(s, axis=-1)
        o = jnp.einsum("bhqk,bkhd->bqhd", w, v, precision=hi).reshape(B, T, D)
        o = jnp.einsum("btd,ed->bte", o, p["wo"], precision=hi) + p["bo"]
        y = xb + o
        mu = y.mean(-1, keepdims=True)
        var = ((y - mu) ** 2).mean(-1, keepdims=True)
        y = (y - mu) * jax.lax.rsqrt(var + 1e-5) * p["g1"] + p["be1"]
        h = jax.nn.relu(jnp.einsum("btd,fd->btf", y, p["w1"], precision=hi) + p["b1"])
        f = jnp.einsum("btf,df->btd", h, p["w2"], precision=hi) + p["b2"]
        z = y + f
        mu2 = z.mean(-1, keepdims=True)
        var2 = ((z - mu2) ** 2).mean(-1, keepdims=True)
        xb = (z - mu2) * jax.lax.rsqrt(var2 + 1e-5) * p["g2"] + p["be2"]
    return jnp.transpose(xb, (1, 0, 2))


# ----------------------------------------------------------------------------
# Deterministic parameter init (same shapes as the PyTorch module's __init__).
# ----------------------------------------------------------------------------
def init_params(key, d_model, nhead, dim_feedforward, num_layers):
    keys = jax.random.split(key, 1 + num_layers)
    token = jax.random.normal(keys[0], (1, 1, d_model), jnp.float32)
    layers = []
    for i in range(num_layers):
        ks = jax.random.split(keys[1 + i], 6)
        s = 0.1
        layers.append(dict(
            wqkv=jax.random.normal(ks[0], (3 * d_model, d_model), jnp.float32) * s,
            bqkv=jax.random.normal(ks[1], (3 * d_model,), jnp.float32) * s,
            wo=jax.random.normal(ks[2], (d_model, d_model), jnp.float32) * s,
            bo=jax.random.normal(ks[3], (d_model,), jnp.float32) * s,
            w1=jax.random.normal(ks[4], (dim_feedforward, d_model), jnp.float32) * s,
            b1=jnp.zeros((dim_feedforward,), jnp.float32),
            w2=jax.random.normal(ks[5], (d_model, dim_feedforward), jnp.float32) * s,
            b2=jnp.zeros((d_model,), jnp.float32),
            g1=jnp.ones((d_model,), jnp.float32),
            be1=jnp.zeros((d_model,), jnp.float32),
            g2=jnp.ones((d_model,), jnp.float32),
            be2=jnp.zeros((d_model,), jnp.float32),
        ))
    return dict(token=token, layers=layers)


if __name__ == "__main__":
    d_model, nhead, dim_feedforward, num_layers = 32, 4, 64, 2
    S, B = 8, 2

    key = jax.random.PRNGKey(0)
    kp, kx = jax.random.split(key)
    params = init_params(kp, d_model, nhead, dim_feedforward, num_layers)

    x = jax.random.normal(kx, (S, B, d_model), jnp.float32)        # (S, B, D)
    # pad the last two positions of batch element 1
    src_key_padding_mask = jnp.zeros((B, S), dtype=bool).at[1, -2:].set(True)

    out = transformer_with_token_forward(params, x, src_key_padding_mask, nhead)
    out = jax.block_until_ready(out)
    assert out.shape == (S + 1, B, d_model)

    ref = jax.block_until_ready(_ref_forward(params, x, src_key_padding_mask, nhead))
    # Tolerance accounts for bf16 matmul operands (f32 accumulation) and the
    # approximate EUP reciprocal in the softmax, compared against an f32
    # reference; structural bugs would produce O(1) errors.
    err = jnp.max(jnp.abs(out - ref))
    assert jnp.allclose(out, ref, atol=5e-2, rtol=5e-2), f"max err {err}"

    print("KERNEL_OK")
</pallas_src>

<mosaic_0001>
module attributes {stable_mosaic.version = 11 : i64} {
  func.func @_layer_kernel(%arg0: i32, %arg1: i32, %arg2: memref<1x16x32xf32, #tpu.memory_space<vmem>>, %arg3: memref<1x1x16xf32, #tpu.memory_space<vmem>>, %arg4: memref<1x32x32xbf16, #tpu.memory_space<vmem>>, %arg5: memref<1x1x32xf32, #tpu.memory_space<vmem>>, %arg6: memref<1x32x32xbf16, #tpu.memory_space<vmem>>, %arg7: memref<1x1x32xf32, #tpu.memory_space<vmem>>, %arg8: memref<1x32x32xbf16, #tpu.memory_space<vmem>>, %arg9: memref<1x1x32xf32, #tpu.memory_space<vmem>>, %arg10: memref<1x32x32xbf16, #tpu.memory_space<vmem>>, %arg11: memref<1x1x32xf32, #tpu.memory_space<vmem>>, %arg12: memref<1x32x64xbf16, #tpu.memory_space<vmem>>, %arg13: memref<1x1x64xf32, #tpu.memory_space<vmem>>, %arg14: memref<1x64x32xbf16, #tpu.memory_space<vmem>>, %arg15: memref<1x1x32xf32, #tpu.memory_space<vmem>>, %arg16: memref<1x1x32xf32, #tpu.memory_space<vmem>>, %arg17: memref<1x1x32xf32, #tpu.memory_space<vmem>>, %arg18: memref<1x1x32xf32, #tpu.memory_space<vmem>>, %arg19: memref<1x1x32xf32, #tpu.memory_space<vmem>>, %arg20: memref<1x16x32xf32, #tpu.memory_space<vmem>>, %arg21: memref<16x32xbf16, #tpu.memory_space<vmem>>, %arg22: memref<16x32xbf16, #tpu.memory_space<vmem>>, %arg23: memref<16x32xbf16, #tpu.memory_space<vmem>>, %arg24: memref<16x32xbf16, #tpu.memory_space<vmem>>) attributes {dimension_semantics = [#tpu.dimension_semantics<parallel>, #tpu.dimension_semantics<arbitrary>], iteration_bounds = array<i64: 2, 2>, scalar_prefetch = 0 : i64, scratch_operands = 4 : i64, tpu.core_type = #tpu.core_type<tc>, window_params = [{transform_indices = @transform_0, window_bounds = array<i64: 1, 16, 32>}, {transform_indices = @transform_1, window_bounds = array<i64: 1, 1, 16>}, {transform_indices = @transform_2, window_bounds = array<i64: 1, 32, 32>}, {transform_indices = @transform_3, window_bounds = array<i64: 1, 1, 32>}, {transform_indices = @transform_4, window_bounds = array<i64: 1, 32, 32>}, {transform_indices = @transform_5, window_bounds = array<i64: 1, 1, 32>}, {transform_indices = @transform_6, window_bounds = array<i64: 1, 32, 32>}, {transform_indices = @transform_7, window_bounds = array<i64: 1, 1, 32>}, {transform_indices = @transform_8, window_bounds = array<i64: 1, 32, 32>}, {transform_indices = @transform_9, window_bounds = array<i64: 1, 1, 32>}, {transform_indices = @transform_10, window_bounds = array<i64: 1, 32, 64>}, {transform_indices = @transform_11, window_bounds = array<i64: 1, 1, 64>}, {transform_indices = @transform_12, window_bounds = array<i64: 1, 64, 32>}, {transform_indices = @transform_13, window_bounds = array<i64: 1, 1, 32>}, {transform_indices = @transform_14, window_bounds = array<i64: 1, 1, 32>}, {transform_indices = @transform_15, window_bounds = array<i64: 1, 1, 32>}, {transform_indices = @transform_16, window_bounds = array<i64: 1, 1, 32>}, {transform_indices = @transform_17, window_bounds = array<i64: 1, 1, 32>}, {transform_indices = @transform_18, window_bounds = array<i64: 1, 16, 32>}]} {
    %c0_i32 = arith.constant 0 : i32
    %0 = arith.cmpi eq, %arg1, %c0_i32 : i32
    %1 = arith.extui %0 : i1 to i32
    %c0_i32_0 = arith.constant 0 : i32
    %2 = arith.cmpi ne, %1, %c0_i32_0 : i32
    scf.if %2 {
      %c0_126 = arith.constant 0 : index
      %c0_127 = arith.constant 0 : index
      %c0_128 = arith.constant 0 : index
      %198 = vector.load %arg2[%c0_126, %c0_127, %c0_128] : memref<1x16x32xf32, #tpu.memory_space<vmem>>, vector<1x16x32xf32>
      %199 = vector.shape_cast %198 : vector<1x16x32xf32> to vector<16x32xf32>
      %c0_129 = arith.constant 0 : index
      %c0_130 = arith.constant 0 : index
      %c0_131 = arith.constant 0 : index
      %200 = vector.load %arg20[%c0_129, %c0_130, %c0_131] : memref<1x16x32xf32, #tpu.memory_space<vmem>>, vector<1x16x32xf32>
      %201 = vector.shape_cast %200 : vector<1x16x32xf32> to vector<16x32xf32>
      %202 = vector.shape_cast %199 : vector<16x32xf32> to vector<1x16x32xf32>
      tpu.vector_store %arg20[%c0_129, %c0_130, %c0_131], %202 {strides = array<i32>} : memref<1x16x32xf32, #tpu.memory_space<vmem>>, vector<1x16x32xf32>,
    } else {
    }
    %c0 = arith.constant 0 : index
    %c0_1 = arith.constant 0 : index
    %c0_2 = arith.constant 0 : index
    %3 = vector.load %arg20[%c0, %c0_1, %c0_2] : memref<1x16x32xf32, #tpu.memory_space<vmem>>, vector<1x16x32xf32>
    %4 = vector.shape_cast %3 : vector<1x16x32xf32> to vector<16x32xf32>
    %5 = arith.truncf %4 : vector<16x32xf32> to vector<16x32xbf16>
    %c0_3 = arith.constant 0 : index
    %c0_4 = arith.constant 0 : index
    %c0_5 = arith.constant 0 : index
    %6 = vector.load %arg3[%c0_3, %c0_4, %c0_5] : memref<1x1x16xf32, #tpu.memory_space<vmem>>, vector<1x1x16xf32>
    %7 = vector.shape_cast %6 : vector<1x1x16xf32> to vector<1x16xf32>
    %c0_6 = arith.constant 0 : index
    %c0_7 = arith.constant 0 : index
    %c0_8 = arith.constant 0 : index
    %8 = vector.load %arg4[%c0_6, %c0_7, %c0_8] : memref<1x32x32xbf16, #tpu.memory_space<vmem>>, vector<1x32x32xbf16>
    %9 = vector.shape_cast %8 : vector<1x32x32xbf16> to vector<32x32xbf16>
    %cst = arith.constant dense<0.000000e+00> : vector<16x32xf32>
    %10 = tpu.matmul %5, %9, %cst {dimension_numbers = #tpu.dot_dimension_numbers<[1], [0], [0], [1], [0, 0, 1, 1], [], []>} : vector<16x32xbf16>, vector<32x32xbf16>, vector<16x32xf32> -> vector<16x32xf32>
    %c0_9 = arith.constant 0 : index
    %c0_10 = arith.constant 0 : index
    %c0_11 = arith.constant 0 : index
    %11 = vector.load %arg5[%c0_9, %c0_10, %c0_11] : memref<1x1x32xf32, #tpu.memory_space<vmem>>, vector<1x1x32xf32>
    %12 = vector.shape_cast %11 : vector<1x1x32xf32> to vector<1x32xf32>
    %13 = vector.broadcast %12 : vector<1x32xf32> to vector<16x32xf32>
    %14 = arith.addf %10, %13 : vector<16x32xf32>
    %15 = arith.truncf %14 : vector<16x32xf32> to vector<16x32xbf16>
    %c0_12 = arith.constant 0 : index
    %c0_13 = arith.constant 0 : index
    %16 = vector.load %arg21[%c0_12, %c0_13] : memref<16x32xbf16, #tpu.memory_space<vmem>>, vector<16x32xbf16>
    tpu.vector_store %arg21[%c0_12, %c0_13], %15 {strides = array<i32>} : memref<16x32xbf16, #tpu.memory_space<vmem>>, vector<16x32xbf16>,
    %c0_14 = arith.constant 0 : index
    %c0_15 = arith.constant 0 : index
    %c0_16 = arith.constant 0 : index
    %17 = vector.load %arg6[%c0_14, %c0_15, %c0_16] : memref<1x32x32xbf16, #tpu.memory_space<vmem>>, vector<1x32x32xbf16>
    %18 = vector.shape_cast %17 : vector<1x32x32xbf16> to vector<32x32xbf16>
    %cst_17 = arith.constant dense<0.000000e+00> : vector<16x32xf32>
    %19 = tpu.matmul %5, %18, %cst_17 {dimension_numbers = #tpu.dot_dimension_numbers<[1], [0], [0], [1], [0, 0, 1, 1], [], []>} : vector<16x32xbf16>, vector<32x32xbf16>, vector<16x32xf32> -> vector<16x32xf32>
    %c0_18 = arith.constant 0 : index
    %c0_19 = arith.constant 0 : index
    %c0_20 = arith.constant 0 : index
    %20 = vector.load %arg7[%c0_18, %c0_19, %c0_20] : memref<1x1x32xf32, #tpu.memory_space<vmem>>, vector<1x1x32xf32>
    %21 = vector.shape_cast %20 : vector<1x1x32xf32> to vector<1x32xf32>
    %22 = vector.broadcast %21 : vector<1x32xf32> to vector<16x32xf32>
    %23 = arith.addf %19, %22 : vector<16x32xf32>
    %24 = arith.truncf %23 : vector<16x32xf32> to vector<16x32xbf16>
    %c0_21 = arith.constant 0 : index
    %c0_22 = arith.constant 0 : index
    %25 = vector.load %arg22[%c0_21, %c0_22] : memref<16x32xbf16, #tpu.memory_space<vmem>>, vector<16x32xbf16>
    tpu.vector_store %arg22[%c0_21, %c0_22], %24 {strides = array<i32>} : memref<16x32xbf16, #tpu.memory_space<vmem>>, vector<16x32xbf16>,
    %c0_23 = arith.constant 0 : index
    %c0_24 = arith.constant 0 : index
    %c0_25 = arith.constant 0 : index
    %26 = vector.load %arg8[%c0_23, %c0_24, %c0_25] : memref<1x32x32xbf16, #tpu.memory_space<vmem>>, vector<1x32x32xbf16>
    %27 = vector.shape_cast %26 : vector<1x32x32xbf16> to vector<32x32xbf16>
    %cst_26 = arith.constant dense<0.000000e+00> : vector<16x32xf32>
    %28 = tpu.matmul %5, %27, %cst_26 {dimension_numbers = #tpu.dot_dimension_numbers<[1], [0], [0], [1], [0, 0, 1, 1], [], []>} : vector<16x32xbf16>, vector<32x32xbf16>, vector<16x32xf32> -> vector<16x32xf32>
    %c0_27 = arith.constant 0 : index
    %c0_28 = arith.constant 0 : index
    %c0_29 = arith.constant 0 : index
    %29 = vector.load %arg9[%c0_27, %c0_28, %c0_29] : memref<1x1x32xf32, #tpu.memory_space<vmem>>, vector<1x1x32xf32>
    %30 = vector.shape_cast %29 : vector<1x1x32xf32> to vector<1x32xf32>
    %31 = vector.broadcast %30 : vector<1x32xf32> to vector<16x32xf32>
    %32 = arith.addf %28, %31 : vector<16x32xf32>
    %33 = arith.truncf %32 : vector<16x32xf32> to vector<16x32xbf16>
    %c0_30 = arith.constant 0 : index
    %c0_31 = arith.constant 0 : index
    %34 = vector.load %arg23[%c0_30, %c0_31] : memref<16x32xbf16, #tpu.memory_space<vmem>>, vector<16x32xbf16>
    tpu.vector_store %arg23[%c0_30, %c0_31], %33 {strides = array<i32>} : memref<16x32xbf16, #tpu.memory_space<vmem>>, vector<16x32xbf16>,
    %c0_32 = arith.constant 0 : index
    %c0_33 = arith.constant 0 : index
    %35 = vector.load %arg21[%c0_32, %c0_33] : memref<16x32xbf16, #tpu.memory_space<vmem>>, vector<16x8xbf16>
    %c0_34 = arith.constant 0 : index
    %c0_35 = arith.constant 0 : index
    %36 = vector.load %arg22[%c0_34, %c0_35] : memref<16x32xbf16, #tpu.memory_space<vmem>>, vector<16x8xbf16>
    %c0_36 = arith.constant 0 : index
    %c0_37 = arith.constant 0 : index
    %37 = vector.load %arg23[%c0_36, %c0_37] : memref<16x32xbf16, #tpu.memory_space<vmem>>, vector<16x8xbf16>
    %cst_38 = arith.constant dense<0.000000e+00> : vector<16x16xf32>
    %38 = tpu.matmul %35, %36, %cst_38 {dimension_numbers = #tpu.dot_dimension_numbers<[1], [1], [0], [0], [0, 0, 1, 0], [], []>} : vector<16x8xbf16>, vector<16x8xbf16>, vector<16x16xf32> -> vector<16x16xf32>
    %39 = vector.broadcast %7 : vector<1x16xf32> to vector<16x16xf32>
    %40 = arith.addf %38, %39 : vector<16x16xf32>
    %cst_39 = arith.constant dense<0xFF800000> : vector<16xf32>
    %41 = vector.multi_reduction <maximumf>, %40, %cst_39 [1] : vector<16x16xf32> to vector<16xf32>
    %42 = vector.shape_cast %41 : vector<16xf32> to vector<16x1xf32>
    %43 = vector.broadcast %42 : vector<16x1xf32> to vector<16x16xf32>
    %44 = arith.subf %40, %43 : vector<16x16xf32>
    %45 = math.exp %44 : vector<16x16xf32>
    %cst_40 = arith.constant dense<0.000000e+00> : vector<16xf32>
    %46 = vector.multi_reduction <add>, %45, %cst_40 [1] : vector<16x16xf32> to vector<16xf32>
    %47 = vector.shape_cast %46 : vector<16xf32> to vector<16x1xf32>
    %48 = tpu.reciprocal %47 {approx = true} : vector<16x1xf32> -> vector<16x1xf32>
    %49 = vector.broadcast %48 : vector<16x1xf32> to vector<16x16xf32>
    %50 = arith.mulf %45, %49 : vector<16x16xf32>
    %51 = arith.truncf %50 : vector<16x16xf32> to vector<16x16xbf16>
    %cst_41 = arith.constant dense<0.000000e+00> : vector<16x8xf32>
    %52 = tpu.matmul %51, %37, %cst_41 {dimension_numbers = #tpu.dot_dimension_numbers<[1], [0], [0], [1], [0, 0, 1, 1], [], []>} : vector<16x16xbf16>, vector<16x8xbf16>, vector<16x8xf32> -> vector<16x8xf32>
    %53 = arith.truncf %52 : vector<16x8xf32> to vector<16x8xbf16>
    %c0_42 = arith.constant 0 : index
    %c0_43 = arith.constant 0 : index
    %54 = vector.load %arg24[%c0_42, %c0_43] : memref<16x32xbf16, #tpu.memory_space<vmem>>, vector<16x8xbf16>
    tpu.vector_store %arg24[%c0_42, %c0_43], %53 {strides = array<i32>} : memref<16x32xbf16, #tpu.memory_space<vmem>>, vector<16x8xbf16>,
    %c0_44 = arith.constant 0 : index
    %c8 = arith.constant 8 : index
    %55 = vector.load %arg21[%c0_44, %c8] : memref<16x32xbf16, #tpu.memory_space<vmem>>, vector<16x8xbf16>
    %c0_45 = arith.constant 0 : index
    %c8_46 = arith.constant 8 : index
    %56 = vector.load %arg22[%c0_45, %c8_46] : memref<16x32xbf16, #tpu.memory_space<vmem>>, vector<16x8xbf16>
    %c0_47 = arith.constant 0 : index
    %c8_48 = arith.constant 8 : index
    %57 = vector.load %arg23[%c0_47, %c8_48] : memref<16x32xbf16, #tpu.memory_space<vmem>>, vector<16x8xbf16>
    %cst_49 = arith.constant dense<0.000000e+00> : vector<16x16xf32>
    %58 = tpu.matmul %55, %56, %cst_49 {dimension_numbers = #tpu.dot_dimension_numbers<[1], [1], [0], [0], [0, 0, 1, 0], [], []>} : vector<16x8xbf16>, vector<16x8xbf16>, vector<16x16xf32> -> vector<16x16xf32>
    %59 = vector.broadcast %7 : vector<1x16xf32> to vector<16x16xf32>
    %60 = arith.addf %58, %59 : vector<16x16xf32>
    %cst_50 = arith.constant dense<0xFF800000> : vector<16xf32>
    %61 = vector.multi_reduction <maximumf>, %60, %cst_50 [1] : vector<16x16xf32> to vector<16xf32>
    %62 = vector.shape_cast %61 : vector<16xf32> to vector<16x1xf32>
    %63 = vector.broadcast %62 : vector<16x1xf32> to vector<16x16xf32>
    %64 = arith.subf %60, %63 : vector<16x16xf32>
    %65 = math.exp %64 : vector<16x16xf32>
    %cst_51 = arith.constant dense<0.000000e+00> : vector<16xf32>
    %66 = vector.multi_reduction <add>, %65, %cst_51 [1] : vector<16x16xf32> to vector<16xf32>
    %67 = vector.shape_cast %66 : vector<16xf32> to vector<16x1xf32>
    %68 = tpu.reciprocal %67 {approx = true} : vector<16x1xf32> -> vector<16x1xf32>
    %69 = vector.broadcast %68 : vector<16x1xf32> to vector<16x16xf32>
    %70 = arith.mulf %65, %69 : vector<16x16xf32>
    %71 = arith.truncf %70 : vector<16x16xf32> to vector<16x16xbf16>
    %cst_52 = arith.constant dense<0.000000e+00> : vector<16x8xf32>
    %72 = tpu.matmul %71, %57, %cst_52 {dimension_numbers = #tpu.dot_dimension_numbers<[1], [0], [0], [1], [0, 0, 1, 1], [], []>} : vector<16x16xbf16>, vector<16x8xbf16>, vector<16x8xf32> -> vector<16x8xf32>
    %73 = arith.truncf %72 : vector<16x8xf32> to vector<16x8xbf16>
    %c0_53 = arith.constant 0 : index
    %c8_54 = arith.constant 8 : index
    %74 = vector.load %arg24[%c0_53, %c8_54] : memref<16x32xbf16, #tpu.memory_space<vmem>>, vector<16x8xbf16>
    tpu.vector_store %arg24[%c0_53, %c8_54], %73 {strides = array<i32>} : memref<16x32xbf16, #tpu.memory_space<vmem>>, vector<16x8xbf16>,
    %c0_55 = arith.constant 0 : index
    %c16 = arith.constant 16 : index
    %75 = vector.load %arg21[%c0_55, %c16] : memref<16x32xbf16, #tpu.memory_space<vmem>>, vector<16x8xbf16>
    %c0_56 = arith.constant 0 : index
    %c16_57 = arith.constant 16 : index
    %76 = vector.load %arg22[%c0_56, %c16_57] : memref<16x32xbf16, #tpu.memory_space<vmem>>, vector<16x8xbf16>
    %c0_58 = arith.constant 0 : index
    %c16_59 = arith.constant 16 : index
    %77 = vector.load %arg23[%c0_58, %c16_59] : memref<16x32xbf16, #tpu.memory_space<vmem>>, vector<16x8xbf16>
    %cst_60 = arith.constant dense<0.000000e+00> : vector<16x16xf32>
    %78 = tpu.matmul %75, %76, %cst_60 {dimension_numbers = #tpu.dot_dimension_numbers<[1], [1], [0], [0], [0, 0, 1, 0], [], []>} : vector<16x8xbf16>, vector<16x8xbf16>, vector<16x16xf32> -> vector<16x16xf32>
    %79 = vector.broadcast %7 : vector<1x16xf32> to vector<16x16xf32>
    %80 = arith.addf %78, %79 : vector<16x16xf32>
    %cst_61 = arith.constant dense<0xFF800000> : vector<16xf32>
    %81 = vector.multi_reduction <maximumf>, %80, %cst_61 [1] : vector<16x16xf32> to vector<16xf32>
    %82 = vector.shape_cast %81 : vector<16xf32> to vector<16x1xf32>
    %83 = vector.broadcast %82 : vector<16x1xf32> to vector<16x16xf32>
    %84 = arith.subf %80, %83 : vector<16x16xf32>
    %85 = math.exp %84 : vector<16x16xf32>
    %cst_62 = arith.constant dense<0.000000e+00> : vector<16xf32>
    %86 = vector.multi_reduction <add>, %85, %cst_62 [1] : vector<16x16xf32> to vector<16xf32>
    %87 = vector.shape_cast %86 : vector<16xf32> to vector<16x1xf32>
    %88 = tpu.reciprocal %87 {approx = true} : vector<16x1xf32> -> vector<16x1xf32>
    %89 = vector.broadcast %88 : vector<16x1xf32> to vector<16x16xf32>
    %90 = arith.mulf %85, %89 : vector<16x16xf32>
    %91 = arith.truncf %90 : vector<16x16xf32> to vector<16x16xbf16>
    %cst_63 = arith.constant dense<0.000000e+00> : vector<16x8xf32>
    %92 = tpu.matmul %91, %77, %cst_63 {dimension_numbers = #tpu.dot_dimension_numbers<[1], [0], [0], [1], [0, 0, 1, 1], [], []>} : vector<16x16xbf16>, vector<16x8xbf16>, vector<16x8xf32> -> vector<16x8xf32>
    %93 = arith.truncf %92 : vector<16x8xf32> to vector<16x8xbf16>
    %c0_64 = arith.constant 0 : index
    %c16_65 = arith.constant 16 : index
    %94 = vector.load %arg24[%c0_64, %c16_65] : memref<16x32xbf16, #tpu.memory_space<vmem>>, vector<16x8xbf16>
    tpu.vector_store %arg24[%c0_64, %c16_65], %93 {strides = array<i32>} : memref<16x32xbf16, #tpu.memory_space<vmem>>, vector<16x8xbf16>,
    %c0_66 = arith.constant 0 : index
    %c24 = arith.constant 24 : index
    %95 = vector.load %arg21[%c0_66, %c24] : memref<16x32xbf16, #tpu.memory_space<vmem>>, vector<16x8xbf16>
    %c0_67 = arith.constant 0 : index
    %c24_68 = arith.constant 24 : index
    %96 = vector.load %arg22[%c0_67, %c24_68] : memref<16x32xbf16, #tpu.memory_space<vmem>>, vector<16x8xbf16>
    %c0_69 = arith.constant 0 : index
    %c24_70 = arith.constant 24 : index
    %97 = vector.load %arg23[%c0_69, %c24_70] : memref<16x32xbf16, #tpu.memory_space<vmem>>, vector<16x8xbf16>
    %cst_71 = arith.constant dense<0.000000e+00> : vector<16x16xf32>
    %98 = tpu.matmul %95, %96, %cst_71 {dimension_numbers = #tpu.dot_dimension_numbers<[1], [1], [0], [0], [0, 0, 1, 0], [], []>} : vector<16x8xbf16>, vector<16x8xbf16>, vector<16x16xf32> -> vector<16x16xf32>
    %99 = vector.broadcast %7 : vector<1x16xf32> to vector<16x16xf32>
    %100 = arith.addf %98, %99 : vector<16x16xf32>
    %cst_72 = arith.constant dense<0xFF800000> : vector<16xf32>
    %101 = vector.multi_reduction <maximumf>, %100, %cst_72 [1] : vector<16x16xf32> to vector<16xf32>
    %102 = vector.shape_cast %101 : vector<16xf32> to vector<16x1xf32>
    %103 = vector.broadcast %102 : vector<16x1xf32> to vector<16x16xf32>
    %104 = arith.subf %100, %103 : vector<16x16xf32>
    %105 = math.exp %104 : vector<16x16xf32>
    %cst_73 = arith.constant dense<0.000000e+00> : vector<16xf32>
    %106 = vector.multi_reduction <add>, %105, %cst_73 [1] : vector<16x16xf32> to vector<16xf32>
    %107 = vector.shape_cast %106 : vector<16xf32> to vector<16x1xf32>
    %108 = tpu.reciprocal %107 {approx = true} : vector<16x1xf32> -> vector<16x1xf32>
    %109 = vector.broadcast %108 : vector<16x1xf32> to vector<16x16xf32>
    %110 = arith.mulf %105, %109 : vector<16x16xf32>
    %111 = arith.truncf %110 : vector<16x16xf32> to vector<16x16xbf16>
    %cst_74 = arith.constant dense<0.000000e+00> : vector<16x8xf32>
    %112 = tpu.matmul %111, %97, %cst_74 {dimension_numbers = #tpu.dot_dimension_numbers<[1], [0], [0], [1], [0, 0, 1, 1], [], []>} : vector<16x16xbf16>, vector<16x8xbf16>, vector<16x8xf32> -> vector<16x8xf32>
    %113 = arith.truncf %112 : vector<16x8xf32> to vector<16x8xbf16>
    %c0_75 = arith.constant 0 : index
    %c24_76 = arith.constant 24 : index
    %114 = vector.load %arg24[%c0_75, %c24_76] : memref<16x32xbf16, #tpu.memory_space<vmem>>, vector<16x8xbf16>
    tpu.vector_store %arg24[%c0_75, %c24_76], %113 {strides = array<i32>} : memref<16x32xbf16, #tpu.memory_space<vmem>>, vector<16x8xbf16>,
    %c0_77 = arith.constant 0 : index
    %c0_78 = arith.constant 0 : index
    %115 = vector.load %arg24[%c0_77, %c0_78] : memref<16x32xbf16, #tpu.memory_space<vmem>>, vector<16x32xbf16>
    %c0_79 = arith.constant 0 : index
    %c0_80 = arith.constant 0 : index
    %c0_81 = arith.constant 0 : index
    %116 = vector.load %arg10[%c0_79, %c0_80, %c0_81] : memref<1x32x32xbf16, #tpu.memory_space<vmem>>, vector<1x32x32xbf16>
    %117 = vector.shape_cast %116 : vector<1x32x32xbf16> to vector<32x32xbf16>
    %cst_82 = arith.constant dense<0.000000e+00> : vector<16x32xf32>
    %118 = tpu.matmul %115, %117, %cst_82 {dimension_numbers = #tpu.dot_dimension_numbers<[1], [0], [0], [1], [0, 0, 1, 1], [], []>} : vector<16x32xbf16>, vector<32x32xbf16>, vector<16x32xf32> -> vector<16x32xf32>
    %c0_83 = arith.constant 0 : index
    %c0_84 = arith.constant 0 : index
    %c0_85 = arith.constant 0 : index
    %119 = vector.load %arg11[%c0_83, %c0_84, %c0_85] : memref<1x1x32xf32, #tpu.memory_space<vmem>>, vector<1x1x32xf32>
    %120 = vector.shape_cast %119 : vector<1x1x32xf32> to vector<1x32xf32>
    %121 = vector.broadcast %120 : vector<1x32xf32> to vector<16x32xf32>
    %122 = arith.addf %118, %121 : vector<16x32xf32>
    %123 = arith.addf %4, %122 : vector<16x32xf32>
    %cst_86 = arith.constant dense<0.000000e+00> : vector<16xf32>
    %124 = vector.multi_reduction <add>, %123, %cst_86 [1] : vector<16x32xf32> to vector<16xf32>
    %125 = vector.shape_cast %124 : vector<16xf32> to vector<16x1xf32>
    %cst_87 = arith.constant 3.200000e+01 : f32
    %126 = vector.broadcast %cst_87 : f32 to vector<16x1xf32>
    %127 = arith.divf %125, %126 : vector<16x1xf32>
    %128 = vector.broadcast %127 : vector<16x1xf32> to vector<16x32xf32>
    %129 = arith.subf %123, %128 : vector<16x32xf32>
    %130 = arith.mulf %129, %129 : vector<16x32xf32>
    %cst_88 = arith.constant dense<0.000000e+00> : vector<16xf32>
    %131 = vector.multi_reduction <add>, %130, %cst_88 [1] : vector<16x32xf32> to vector<16xf32>
    %132 = vector.shape_cast %131 : vector<16xf32> to vector<16x1xf32>
    %cst_89 = arith.constant 3.200000e+01 : f32
    %133 = vector.broadcast %cst_89 : f32 to vector<16x1xf32>
    %134 = arith.divf %132, %133 : vector<16x1xf32>
    %135 = vector.broadcast %127 : vector<16x1xf32> to vector<16x32xf32>
    %136 = arith.subf %123, %135 : vector<16x32xf32>
    %cst_90 = arith.constant 9.99999974E-6 : f32
    %137 = vector.broadcast %cst_90 : f32 to vector<16x1xf32>
    %138 = arith.addf %134, %137 : vector<16x1xf32>
    %139 = math.rsqrt %138 : vector<16x1xf32>
    %140 = vector.broadcast %139 : vector<16x1xf32> to vector<16x32xf32>
    %141 = arith.mulf %136, %140 : vector<16x32xf32>
    %c0_91 = arith.constant 0 : index
    %c0_92 = arith.constant 0 : index
    %c0_93 = arith.constant 0 : index
    %142 = vector.load %arg16[%c0_91, %c0_92, %c0_93] : memref<1x1x32xf32, #tpu.memory_space<vmem>>, vector<1x1x32xf32>
    %143 = vector.shape_cast %142 : vector<1x1x32xf32> to vector<1x32xf32>
    %144 = vector.broadcast %143 : vector<1x32xf32> to vector<16x32xf32>
    %145 = arith.mulf %141, %144 : vector<16x32xf32>
    %c0_94 = arith.constant 0 : index
    %c0_95 = arith.constant 0 : index
    %c0_96 = arith.constant 0 : index
    %146 = vector.load %arg17[%c0_94, %c0_95, %c0_96] : memref<1x1x32xf32, #tpu.memory_space<vmem>>, vector<1x1x32xf32>
    %147 = vector.shape_cast %146 : vector<1x1x32xf32> to vector<1x32xf32>
    %148 = vector.broadcast %147 : vector<1x32xf32> to vector<16x32xf32>
    %149 = arith.addf %145, %148 : vector<16x32xf32>
    %150 = arith.truncf %149 : vector<16x32xf32> to vector<16x32xbf16>
    %c0_97 = arith.constant 0 : index
    %c0_98 = arith.constant 0 : index
    %c0_99 = arith.constant 0 : index
    %151 = vector.load %arg12[%c0_97, %c0_98, %c0_99] : memref<1x32x64xbf16, #tpu.memory_space<vmem>>, vector<1x32x64xbf16>
    %152 = vector.shape_cast %151 : vector<1x32x64xbf16> to vector<32x64xbf16>
    %cst_100 = arith.constant dense<0.000000e+00> : vector<16x64xf32>
    %153 = tpu.matmul %150, %152, %cst_100 {dimension_numbers = #tpu.dot_dimension_numbers<[1], [0], [0], [1], [0, 0, 1, 1], [], []>} : vector<16x32xbf16>, vector<32x64xbf16>, vector<16x64xf32> -> vector<16x64xf32>
    %c0_101 = arith.constant 0 : index
    %c0_102 = arith.constant 0 : index
    %c0_103 = arith.constant 0 : index
    %154 = vector.load %arg13[%c0_101, %c0_102, %c0_103] : memref<1x1x64xf32, #tpu.memory_space<vmem>>, vector<1x1x64xf32>
    %155 = vector.shape_cast %154 : vector<1x1x64xf32> to vector<1x64xf32>
    %156 = vector.broadcast %155 : vector<1x64xf32> to vector<16x64xf32>
    %157 = arith.addf %153, %156 : vector<16x64xf32>
    %cst_104 = arith.constant 0.000000e+00 : f32
    %158 = vector.broadcast %cst_104 : f32 to vector<16x64xf32>
    %159 = arith.maximumf %157, %158 : vector<16x64xf32>
    %160 = arith.truncf %159 : vector<16x64xf32> to vector<16x64xbf16>
    %c0_105 = arith.constant 0 : index
    %c0_106 = arith.constant 0 : index
    %c0_107 = arith.constant 0 : index
    %161 = vector.load %arg14[%c0_105, %c0_106, %c0_107] : memref<1x64x32xbf16, #tpu.memory_space<vmem>>, vector<1x64x32xbf16>
    %162 = vector.shape_cast %161 : vector<1x64x32xbf16> to vector<64x32xbf16>
    %cst_108 = arith.constant dense<0.000000e+00> : vector<16x32xf32>
    %163 = tpu.matmul %160, %162, %cst_108 {dimension_numbers = #tpu.dot_dimension_numbers<[1], [0], [0], [1], [0, 0, 1, 1], [], []>} : vector<16x64xbf16>, vector<64x32xbf16>, vector<16x32xf32> -> vector<16x32xf32>
    %c0_109 = arith.constant 0 : index
    %c0_110 = arith.constant 0 : index
    %c0_111 = arith.constant 0 : index
    %164 = vector.load %arg15[%c0_109, %c0_110, %c0_111] : memref<1x1x32xf32, #tpu.memory_space<vmem>>, vector<1x1x32xf32>
    %165 = vector.shape_cast %164 : vector<1x1x32xf32> to vector<1x32xf32>
    %166 = vector.broadcast %165 : vector<1x32xf32> to vector<16x32xf32>
    %167 = arith.addf %163, %166 : vector<16x32xf32>
    %168 = arith.addf %149, %167 : vector<16x32xf32>
    %cst_112 = arith.constant dense<0.000000e+00> : vector<16xf32>
    %169 = vector.multi_reduction <add>, %168, %cst_112 [1] : vector<16x32xf32> to vector<16xf32>
    %170 = vector.shape_cast %169 : vector<16xf32> to vector<16x1xf32>
    %cst_113 = arith.constant 3.200000e+01 : f32
    %171 = vector.broadcast %cst_113 : f32 to vector<16x1xf32>
    %172 = arith.divf %170, %171 : vector<16x1xf32>
    %173 = vector.broadcast %172 : vector<16x1xf32> to vector<16x32xf32>
    %174 = arith.subf %168, %173 : vector<16x32xf32>
    %175 = arith.mulf %174, %174 : vector<16x32xf32>
    %cst_114 = arith.constant dense<0.000000e+00> : vector<16xf32>
    %176 = vector.multi_reduction <add>, %175, %cst_114 [1] : vector<16x32xf32> to vector<16xf32>
    %177 = vector.shape_cast %176 : vector<16xf32> to vector<16x1xf32>
    %cst_115 = arith.constant 3.200000e+01 : f32
    %178 = vector.broadcast %cst_115 : f32 to vector<16x1xf32>
    %179 = arith.divf %177, %178 : vector<16x1xf32>
    %180 = vector.broadcast %172 : vector<16x1xf32> to vector<16x32xf32>
    %181 = arith.subf %168, %180 : vector<16x32xf32>
    %cst_116 = arith.constant 9.99999974E-6 : f32
    %182 = vector.broadcast %cst_116 : f32 to vector<16x1xf32>
    %183 = arith.addf %179, %182 : vector<16x1xf32>
    %184 = math.rsqrt %183 : vector<16x1xf32>
    %185 = vector.broadcast %184 : vector<16x1xf32> to vector<16x32xf32>
    %186 = arith.mulf %181, %185 : vector<16x32xf32>
    %c0_117 = arith.constant 0 : index
    %c0_118 = arith.constant 0 : index
    %c0_119 = arith.constant 0 : index
    %187 = vector.load %arg18[%c0_117, %c0_118, %c0_119] : memref<1x1x32xf32, #tpu.memory_space<vmem>>, vector<1x1x32xf32>
    %188 = vector.shape_cast %187 : vector<1x1x32xf32> to vector<1x32xf32>
    %189 = vector.broadcast %188 : vector<1x32xf32> to vector<16x32xf32>
    %190 = arith.mulf %186, %189 : vector<16x32xf32>
    %c0_120 = arith.constant 0 : index
    %c0_121 = arith.constant 0 : index
    %c0_122 = arith.constant 0 : index
    %191 = vector.load %arg19[%c0_120, %c0_121, %c0_122] : memref<1x1x32xf32, #tpu.memory_space<vmem>>, vector<1x1x32xf32>
    %192 = vector.shape_cast %191 : vector<1x1x32xf32> to vector<1x32xf32>
    %193 = vector.broadcast %192 : vector<1x32xf32> to vector<16x32xf32>
    %194 = arith.addf %190, %193 : vector<16x32xf32>
    %c0_123 = arith.constant 0 : index
    %c0_124 = arith.constant 0 : index
    %c0_125 = arith.constant 0 : index
    %195 = vector.load %arg20[%c0_123, %c0_124, %c0_125] : memref<1x16x32xf32, #tpu.memory_space<vmem>>, vector<1x16x32xf32>
    %196 = vector.shape_cast %195 : vector<1x16x32xf32> to vector<16x32xf32>
    %197 = vector.shape_cast %194 : vector<16x32xf32> to vector<1x16x32xf32>
    tpu.vector_store %arg20[%c0_123, %c0_124, %c0_125], %197 {strides = array<i32>} : memref<1x16x32xf32, #tpu.memory_space<vmem>>, vector<1x16x32xf32>,
    return
  }
  func.func @transform_0(%arg0: i32, %arg1: i32) -> (i32, i32, i32) {
    %c0_i32 = arith.constant 0 : i32
    %c0_i32_0 = arith.constant 0 : i32
    %c0_i32_1 = arith.constant 0 : i32
    return %arg0, %c0_i32, %c0_i32_0 : i32, i32, i32
  }
  func.func @transform_1(%arg0: i32, %arg1: i32) -> (i32, i32, i32) {
    %c0_i32 = arith.constant 0 : i32
    %c0_i32_0 = arith.constant 0 : i32
    %c0_i32_1 = arith.constant 0 : i32
    return %arg0, %c0_i32, %c0_i32_0 : i32, i32, i32
  }
  func.func @transform_2(%arg0: i32, %arg1: i32) -> (i32, i32, i32) {
    %c0_i32 = arith.constant 0 : i32
    %c0_i32_0 = arith.constant 0 : i32
    %c0_i32_1 = arith.constant 0 : i32
    return %arg1, %c0_i32, %c0_i32_0 : i32, i32, i32
  }
  func.func @transform_3(%arg0: i32, %arg1: i32) -> (i32, i32, i32) {
    %c0_i32 = arith.constant 0 : i32
    %c0_i32_0 = arith.constant 0 : i32
    %c0_i32_1 = arith.constant 0 : i32
    return %arg1, %c0_i32, %c0_i32_0 : i32, i32, i32
  }
  func.func @transform_4(%arg0: i32, %arg1: i32) -> (i32, i32, i32) {
    %c0_i32 = arith.constant 0 : i32
    %c0_i32_0 = arith.constant 0 : i32
    %c0_i32_1 = arith.constant 0 : i32
    return %arg1, %c0_i32, %c0_i32_0 : i32, i32, i32
  }
  func.func @transform_5(%arg0: i32, %arg1: i32) -> (i32, i32, i32) {
    %c0_i32 = arith.constant 0 : i32
    %c0_i32_0 = arith.constant 0 : i32
    %c0_i32_1 = arith.constant 0 : i32
    return %arg1, %c0_i32, %c0_i32_0 : i32, i32, i32
  }
  func.func @transform_6(%arg0: i32, %arg1: i32) -> (i32, i32, i32) {
    %c0_i32 = arith.constant 0 : i32
    %c0_i32_0 = arith.constant 0 : i32
    %c0_i32_1 = arith.constant 0 : i32
    return %arg1, %c0_i32, %c0_i32_0 : i32, i32, i32
  }
  func.func @transform_7(%arg0: i32, %arg1: i32) -> (i32, i32, i32) {
    %c0_i32 = arith.constant 0 : i32
    %c0_i32_0 = arith.constant 0 : i32
    %c0_i32_1 = arith.constant 0 : i32
    return %arg1, %c0_i32, %c0_i32_0 : i32, i32, i32
  }
  func.func @transform_8(%arg0: i32, %arg1: i32) -> (i32, i32, i32) {
    %c0_i32 = arith.constant 0 : i32
    %c0_i32_0 = arith.constant 0 : i32
    %c0_i32_1 = arith.constant 0 : i32
    return %arg1, %c0_i32, %c0_i32_0 : i32, i32, i32
  }
  func.func @transform_9(%arg0: i32, %arg1: i32) -> (i32, i32, i32) {
    %c0_i32 = arith.constant 0 : i32
    %c0_i32_0 = arith.constant 0 : i32
    %c0_i32_1 = arith.constant 0 : i32
    return %arg1, %c0_i32, %c0_i32_0 : i32, i32, i32
  }
  func.func @transform_10(%arg0: i32, %arg1: i32) -> (i32, i32, i32) {
    %c0_i32 = arith.constant 0 : i32
    %c0_i32_0 = arith.constant 0 : i32
    %c0_i32_1 = arith.constant 0 : i32
    return %arg1, %c0_i32, %c0_i32_0 : i32, i32, i32
  }
  func.func @transform_11(%arg0: i32, %arg1: i32) -> (i32, i32, i32) {
    %c0_i32 = arith.constant 0 : i32
    %c0_i32_0 = arith.constant 0 : i32
    %c0_i32_1 = arith.constant 0 : i32
    return %arg1, %c0_i32, %c0_i32_0 : i32, i32, i32
  }
  func.func @transform_12(%arg0: i32, %arg1: i32) -> (i32, i32, i32) {
    %c0_i32 = arith.constant 0 : i32
    %c0_i32_0 = arith.constant 0 : i32
    %c0_i32_1 = arith.constant 0 : i32
    return %arg1, %c0_i32, %c0_i32_0 : i32, i32, i32
  }
  func.func @transform_13(%arg0: i32, %arg1: i32) -> (i32, i32, i32) {
    %c0_i32 = arith.constant 0 : i32
    %c0_i32_0 = arith.constant 0 : i32
    %c0_i32_1 = arith.constant 0 : i32
    return %arg1, %c0_i32, %c0_i32_0 : i32, i32, i32
  }
  func.func @transform_14(%arg0: i32, %arg1: i32) -> (i32, i32, i32) {
    %c0_i32 = arith.constant 0 : i32
    %c0_i32_0 = arith.constant 0 : i32
    %c0_i32_1 = arith.constant 0 : i32
    return %arg1, %c0_i32, %c0_i32_0 : i32, i32, i32
  }
  func.func @transform_15(%arg0: i32, %arg1: i32) -> (i32, i32, i32) {
    %c0_i32 = arith.constant 0 : i32
    %c0_i32_0 = arith.constant 0 : i32
    %c0_i32_1 = arith.constant 0 : i32
    return %arg1, %c0_i32, %c0_i32_0 : i32, i32, i32
  }
  func.func @transform_16(%arg0: i32, %arg1: i32) -> (i32, i32, i32) {
    %c0_i32 = arith.constant 0 : i32
    %c0_i32_0 = arith.constant 0 : i32
    %c0_i32_1 = arith.constant 0 : i32
    return %arg1, %c0_i32, %c0_i32_0 : i32, i32, i32
  }
  func.func @transform_17(%arg0: i32, %arg1: i32) -> (i32, i32, i32) {
    %c0_i32 = arith.constant 0 : i32
    %c0_i32_0 = arith.constant 0 : i32
    %c0_i32_1 = arith.constant 0 : i32
    return %arg1, %c0_i32, %c0_i32_0 : i32, i32, i32
  }
  func.func @transform_18(%arg0: i32, %arg1: i32) -> (i32, i32, i32) {
    %c0_i32 = arith.constant 0 : i32
    %c0_i32_0 = arith.constant 0 : i32
    %c0_i32_1 = arith.constant 0 : i32
    return %arg0, %c0_i32, %c0_i32_0 : i32, i32, i32
  }
}

</mosaic_0001>

<llo_original>
// kernel: tpu_custom_call.1
$region0: #{tpu_custom_call.1}
  #allocation0 [shape = 'u32[]', space=smem, size = 0x4, offset = 0x4, fixed_abs, tag = 'smem constant byte address 0x4 - core index']
  #allocation1 [shape = 'u32[144,128]{1,0:T(1,128)}', space=vmem, size = 0x12000, scoped, tag = 'internal scratch']
  #allocation2 [shape = 'bf16[16,32]{1,0:T(8,128)(2,1)}', space=vmem, size = 0x1000, scoped, tag = 'scratch operand']
  #allocation3 [shape = 'bf16[16,32]{1,0:T(8,128)(2,1)}', space=vmem, size = 0x1000, scoped, tag = 'scratch operand']
  #allocation4 [shape = 'bf16[16,32]{1,0:T(8,128)(2,1)}', space=vmem, size = 0x1000, scoped, tag = 'scratch operand']
  #allocation5 [shape = 'bf16[16,32]{1,0:T(8,128)(2,1)}', space=vmem, size = 0x1000, scoped, tag = 'scratch operand']
  %s0 = inlined_call_operand.vmem [shape: f32[2,16,32], index: 0, kind: input, shape index: {}]
  %s1 = inlined_call_operand.hbm [shape: f32[2,1,16], index: 1, kind: input, shape index: {}]
  %s2 = inlined_call_operand.vmem [shape: bf16[2,32,32], index: 2, kind: input, shape index: {}]
  %s3 = inlined_call_operand.vmem [shape: f32[2,1,32], index: 3, kind: input, shape index: {}]
  %s4 = inlined_call_operand.vmem [shape: bf16[2,32,32], index: 4, kind: input, shape index: {}]
  %s5 = inlined_call_operand.vmem [shape: f32[2,1,32], index: 5, kind: input, shape index: {}]
  %s6 = inlined_call_operand.hbm [shape: bf16[2,32,32], index: 6, kind: input, shape index: {}]
  %s7 = inlined_call_operand.vmem [shape: f32[2,1,32], index: 7, kind: input, shape index: {}]
  %s8 = inlined_call_operand.hbm [shape: bf16[2,32,32], index: 8, kind: input, shape index: {}]
  %s9 = inlined_call_operand.vmem [shape: f32[2,1,32], index: 9, kind: input, shape index: {}]
  %s10 = inlined_call_operand.hbm [shape: bf16[2,32,64], index: 10, kind: input, shape index: {}]
  %s11 = inlined_call_operand.vmem [shape: f32[2,1,64], index: 11, kind: input, shape index: {}]
  %s12 = inlined_call_operand.vmem [shape: bf16[2,64,32], index: 12, kind: input, shape index: {}]
  %s13 = inlined_call_operand.vmem [shape: f32[2,1,32], index: 13, kind: input, shape index: {}]
  %s14 = inlined_call_operand.vmem [shape: f32[2,1,32], index: 14, kind: input, shape index: {}]
  %s15 = inlined_call_operand.vmem [shape: f32[2,1,32], index: 15, kind: input, shape index: {}]
  %s16 = inlined_call_operand.vmem [shape: f32[2,1,32], index: 16, kind: input, shape index: {}]
  %s17 = inlined_call_operand.vmem [shape: f32[2,1,32], index: 17, kind: input, shape index: {}]
  %s18 = inlined_call_operand.hbm [shape: f32[2,16,32], index: 18, kind: output, shape index: {}]
  %s19 = sld [smem:[#allocation0]]
  $region125: #{tpu_custom_call.1} parent=0
    _
  %s21 = ssub.s32 1, %s19
  %s22 = scalar_select 0, %s21, %s19
  $region1: #{tpu_custom_call.1} parent=0
    #allocation6 [shape = 'u8[1024]{0}', space=vmem, size = 0x400, scoped, tag = 'input window, operand 1']
    #allocation7 [shape = 's32[2]{0}', space=sflag, size = 0x8, scoped, tag = 'scoped memory for tpu_custom_call.1']
    #allocation8 [shape = 's32[2]{0}', space=sflag, size = 0x8, scoped, tag = 'scoped memory for tpu_custom_call.1']
    #allocation9 [shape = 'u8[16384]{0}', space=vmem, size = 0x4000, scoped, tag = 'input window, operand 6']
    #allocation10 [shape = 's32[2]{0}', space=sflag, size = 0x8, scoped, tag = 'scoped memory for tpu_custom_call.1']
    #allocation11 [shape = 'u8[16384]{0}', space=vmem, size = 0x4000, scoped, tag = 'input window, operand 8']
    #allocation12 [shape = 'u8[16384]{0}', space=vmem, size = 0x4000, scoped, tag = 'input window, operand 10']
    #allocation13 [shape = 's32[2]{0}', space=sflag, size = 0x8, scoped, tag = 'scoped memory for tpu_custom_call.1']
    #allocation14 [shape = 'u8[16384]{0}', space=vmem, size = 0x4000, scoped, tag = 'output window, operand 0']
    %23 = vsyncpa [#allocation7], 0
    %s24 = scalar_lea.sflag [#allocation7], 1
    %25 = vsyncpa %s24, 0
    %26 = vsyncpa [#allocation10], 0
    %s27 = scalar_lea.sflag [#allocation10], 1
    %28 = vsyncpa %s27, 0
    %29 = vsyncpa [#allocation13], 0
    %s30 = scalar_lea.sflag [#allocation13], 1
    %31 = vsyncpa %s30, 0
    %32 = vsyncpa [#allocation8], 0
    %s33 = scalar_lea.sflag [#allocation8], 1
    %34 = vsyncpa %s33, 0
    loop: start=0, step=1, limit=6
    $region2: #{tpu_custom_call.1} parent=1 // loop_pre_header
      _
    $region3: #{tpu_custom_call.1} parent=1 // loop_header
      %s36 = sphi 0, %s40
      %p37 = scmp.ge.s32.totalorder %s36, 6
      %s43 = sphi 0, %s55
      %s44 = sphi 0, %s51
      %s45 = sphi 0, %s43
      %s46 = sphi 0, %s44
      %s47 = sphi 0, %s45
      %s48 = sphi 0, %s46
      %s58 = sphi 0, %s60
      %s61 = sphi 0, %s58
      %s62 = sphi 0, %s61
      %s78 = sphi 0, %s62
      %s84 = sphi 0, %s86
      %s87 = sphi 0, %s84
      %s88 = sphi 0, %s87
      %s104 = sphi 0, %s88
      %s110 = sphi 0, %s112
      %s113 = sphi 0, %s110
      %s114 = sphi 0, %s113
      %s130 = sphi 0, %s114
      %s136 = sphi 0, %s138
      %s139 = sphi 0, %s136
      %s140 = sphi 0, %s139
      %s156 = sphi 0, %s140
      %s162 = sphi 0, %s164
      %s165 = sphi 0, %s162
      %s166 = sphi 0, %s165
      %s182 = sphi 0, %s166
      %s188 = sphi 0, %s190
      %s191 = sphi 0, %s188
      %s192 = sphi 0, %s191
      %s208 = sphi 0, %s192
      %s214 = sphi 0, %s216
      %s217 = sphi 0, %s214
      %s218 = sphi 0, %s217
      %s234 = sphi 0, %s218
      %s240 = sphi 0, %s242
      %s243 = sphi 0, %s240
      %s244 = sphi 0, %s243
      %s260 = sphi 0, %s244
      %s266 = sphi 0, %s268
      %s269 = sphi 0, %s266
      %s270 = sphi 0, %s269
      %s286 = sphi 0, %s270
      %s292 = sphi 0, %s294
      %s295 = sphi 0, %s292
      %s296 = sphi 0, %s295
      %s312 = sphi 0, %s296
      %s318 = sphi 0, %s320
      %s321 = sphi 0, %s318
      %s322 = sphi 0, %s321
      %s338 = sphi 0, %s322
      %s344 = sphi 0, %s346
      %s347 = sphi 0, %s344
      %s348 = sphi 0, %s347
      %s364 = sphi 0, %s348
      %s370 = sphi 0, %s372
      %s373 = sphi 0, %s370
      %s374 = sphi 0, %s373
      %s390 = sphi 0, %s374
      %s396 = sphi 0, %s398
      %s399 = sphi 0, %s396
      %s400 = sphi 0, %s399
      %s416 = sphi 0, %s400
      %s422 = sphi 0, %s424
      %s425 = sphi 0, %s422
      %s426 = sphi 0, %s425
      %s442 = sphi 0, %s426
      %s448 = sphi 0, %s450
      %s451 = sphi 0, %s448
      %s452 = sphi 0, %s451
      %s468 = sphi 0, %s452
      %s474 = sphi 0, %s476
      %s477 = sphi 0, %s474
      %s478 = sphi 0, %s477
      %s494 = sphi 0, %s478
      %s500 = sphi 0, %s502
      %s503 = sphi 0, %s500
      %s504 = sphi 0, %s503
      %s520 = sphi 0, %s504
      %s526 = sphi 0, %s528
      %s529 = sphi 0, %s526
      %s530 = sphi 0, %s529
      %s546 = sphi 0, %s530
    $region4: #{tpu_custom_call.1} parent=1 // loop_header_branch
      %39 = sbr.rel (%p37) target = $region8
    $region5: #{tpu_custom_call.1} parent=1 // loop_body
      %s41 = ssub.s32 %s36, 1
      %s42 = ssub.s32 %s36, 2
      %s49 = sadd.s32 1, %s44
      %p50 = scmp.ge.s32.totalorder %s49, 2
      %s51 = scalar_select %p50, 0, %s49
      %s52 = sadd.s32 1, %s43
      %s53 = scalar_select %p50, %s52, %s43
      %p54 = scmp.ge.s32.totalorder %s53, 2
      %s55 = scalar_select %p54, 0, %s53
      %s56 = ssub.s32 %s43, %s55
      %p57 = scmp.eq.s32.totalorder %s56, 0
      %s59 = sadd.s32 %s58, 1
      %s60 = scalar_select %p57, %s58, %s59
      %p63 = pneg %p57
      %p64 = scmp.eq.s32.totalorder %s36, 3
      %p65 = por %p63, %p64
      %p66 = scmp.ne.s32.totalorder %s58, %s61
      %p67 = scmp.eq.s32.totalorder %s36, 0
      %p68 = por %p66, %p67
      %p69 = scmp.ne.s32.totalorder %s58, %s61
      %p70 = scmp.eq.s32.totalorder %s41, 3
      %p71 = por %p69, %p70
      %p72 = scmp.ne.s32.totalorder %s61, %s62
      %p73 = scmp.eq.s32.totalorder %s41, 0
      %p74 = por %p72, %p73
      %p75 = scmp.ne.s32.totalorder %s61, %s62
      %p76 = scmp.eq.s32.totalorder %s42, 3
      %p77 = por %p75, %p76
      %p79 = scmp.ne.s32.totalorder %s62, %s78
      %p80 = scmp.eq.s32.totalorder %s42, 0
      %p81 = por %p79, %p80
      %s82 = ssub.s32 %s43, %s55
      %p83 = scmp.eq.s32.totalorder %s82, 0
      %s85 = sadd.s32 %s84, 1
      %s86 = scalar_select %p83, %s84, %s85
      %p89 = pneg %p83
      %p90 = scmp.eq.s32.totalorder %s36, 3
      %p91 = por %p89, %p90
      %p92 = scmp.ne.s32.totalorder %s84, %s87
      %p93 = scmp.eq.s32.totalorder %s36, 0
      %p94 = por %p92, %p93
      %p95 = scmp.ne.s32.totalorder %s84, %s87
      %p96 = scmp.eq.s32.totalorder %s41, 3
      %p97 = por %p95, %p96
      %p98 = scmp.ne.s32.totalorder %s87, %s88
      %p99 = scmp.eq.s32.totalorder %s41, 0
      %p100 = por %p98, %p99
      %p101 = scmp.ne.s32.totalorder %s87, %s88
      %p102 = scmp.eq.s32.totalorder %s42, 3
      %p103 = por %p101, %p102
      %p105 = scmp.ne.s32.totalorder %s88, %s104
      %p106 = scmp.eq.s32.totalorder %s42, 0
      %p107 = por %p105, %p106
      %s108 = ssub.s32 %s44, %s51
      %p109 = scmp.eq.s32.totalorder %s108, 0
      %s111 = sadd.s32 %s110, 1
      %s112 = scalar_select %p109, %s110, %s111
      %p115 = pneg %p109
      %p116 = scmp.eq.s32.totalorder %s36, 3
      %p117 = por %p115, %p116
      %p118 = scmp.ne.s32.totalorder %s110, %s113
      %p119 = scmp.eq.s32.totalorder %s36, 0
      %p120 = por %p118, %p119
      %p121 = scmp.ne.s32.totalorder %s110, %s113
      %p122 = scmp.eq.s32.totalorder %s41, 3
      %p123 = por %p121, %p122
      %p124 = scmp.ne.s32.totalorder %s113, %s114
      %p125 = scmp.eq.s32.totalorder %s41, 0
      %p126 = por %p124, %p125
      %p127 = scmp.ne.s32.totalorder %s113, %s114
      %p128 = scmp.eq.s32.totalorder %s42, 3
      %p129 = por %p127, %p128
      %p131 = scmp.ne.s32.totalorder %s114, %s130
      %p132 = scmp.eq.s32.totalorder %s42, 0
      %p133 = por %p131, %p132
      %s134 = ssub.s32 %s44, %s51
      %p135 = scmp.eq.s32.totalorder %s134, 0
      %s137 = sadd.s32 %s136, 1
      %s138 = scalar_select %p135, %s136, %s137
      %p141 = pneg %p135
      %p142 = scmp.eq.s32.totalorder %s36, 3
      %p143 = por %p141, %p142
      %p144 = scmp.ne.s32.totalorder %s136, %s139
      %p145 = scmp.eq.s32.totalorder %s36, 0
      %p146 = por %p144, %p145
      %p147 = scmp.ne.s32.totalorder %s136, %s139
      %p148 = scmp.eq.s32.totalorder %s41, 3
      %p149 = por %p147, %p148
      %p150 = scmp.ne.s32.totalorder %s139, %s140
      %p151 = scmp.eq.s32.totalorder %s41, 0
      %p152 = por %p150, %p151
      %p153 = scmp.ne.s32.totalorder %s139, %s140
      %p154 = scmp.eq.s32.totalorder %s42, 3
      %p155 = por %p153, %p154
      %p157 = scmp.ne.s32.totalorder %s140, %s156
      %p158 = scmp.eq.s32.totalorder %s42, 0
      %p159 = por %p157, %p158
      %s160 = ssub.s32 %s44, %s51
      %p161 = scmp.eq.s32.totalorder %s160, 0
      %s163 = sadd.s32 %s162, 1
      %s164 = scalar_select %p161, %s162, %s163
      %p167 = pneg %p161
      %p168 = scmp.eq.s32.totalorder %s36, 3
      %p169 = por %p167, %p168
      %p170 = scmp.ne.s32.totalorder %s162, %s165
      %p171 = scmp.eq.s32.totalorder %s36, 0
      %p172 = por %p170, %p171
      %p173 = scmp.ne.s32.totalorder %s162, %s165
      %p174 = scmp.eq.s32.totalorder %s41, 3
      %p175 = por %p173, %p174
      %p176 = scmp.ne.s32.totalorder %s165, %s166
      %p177 = scmp.eq.s32.totalorder %s41, 0
      %p178 = por %p176, %p177
      %p179 = scmp.ne.s32.totalorder %s165, %s166
      %p180 = scmp.eq.s32.totalorder %s42, 3
      %p181 = por %p179, %p180
      %p183 = scmp.ne.s32.totalorder %s166, %s182
      %p184 = scmp.eq.s32.totalorder %s42, 0
      %p185 = por %p183, %p184
      %s186 = ssub.s32 %s44, %s51
      %p187 = scmp.eq.s32.totalorder %s186, 0
      %s189 = sadd.s32 %s188, 1
      %s190 = scalar_select %p187, %s188, %s189
      %p193 = pneg %p187
      %p194 = scmp.eq.s32.totalorder %s36, 3
      %p195 = por %p193, %p194
      %p196 = scmp.ne.s32.totalorder %s188, %s191
      %p197 = scmp.eq.s32.totalorder %s36, 0
      %p198 = por %p196, %p197
      %p199 = scmp.ne.s32.totalorder %s188, %s191
      %p200 = scmp.eq.s32.totalorder %s41, 3
      %p201 = por %p199, %p200
      %p202 = scmp.ne.s32.totalorder %s191, %s192
      %p203 = scmp.eq.s32.totalorder %s41, 0
      %p204 = por %p202, %p203
      %p205 = scmp.ne.s32.totalorder %s191, %s192
      %p206 = scmp.eq.s32.totalorder %s42, 3
      %p207 = por %p205, %p206
      %p209 = scmp.ne.s32.totalorder %s192, %s208
      %p210 = scmp.eq.s32.totalorder %s42, 0
      %p211 = por %p209, %p210
      %s212 = ssub.s32 %s44, %s51
      %p213 = scmp.eq.s32.totalorder %s212, 0
      %s215 = sadd.s32 %s214, 1
      %s216 = scalar_select %p213, %s214, %s215
      %p219 = pneg %p213
      %p220 = scmp.eq.s32.totalorder %s36, 3
      %p221 = por %p219, %p220
      %p222 = scmp.ne.s32.totalorder %s214, %s217
      %p223 = scmp.eq.s32.totalorder %s36, 0
      %p224 = por %p222, %p223
      %p225 = scmp.ne.s32.totalorder %s214, %s217
      %p226 = scmp.eq.s32.totalorder %s41, 3
      %p227 = por %p225, %p226
      %p228 = scmp.ne.s32.totalorder %s217, %s218
      %p229 = scmp.eq.s32.totalorder %s41, 0
      %p230 = por %p228, %p229
      %p231 = scmp.ne.s32.totalorder %s217, %s218
      %p232 = scmp.eq.s32.totalorder %s42, 3
      %p233 = por %p231, %p232
      %p235 = scmp.ne.s32.totalorder %s218, %s234
      %p236 = scmp.eq.s32.totalorder %s42, 0
      %p237 = por %p235, %p236
      %s238 = ssub.s32 %s44, %s51
      %p239 = scmp.eq.s32.totalorder %s238, 0
      %s241 = sadd.s32 %s240, 1
      %s242 = scalar_select %p239, %s240, %s241
      %p245 = pneg %p239
      %p246 = scmp.eq.s32.totalorder %s36, 3
      %p247 = por %p245, %p246
      %p248 = scmp.ne.s32.totalorder %s240, %s243
      %p249 = scmp.eq.s32.totalorder %s36, 0
      %p250 = por %p248, %p249
      %p251 = scmp.ne.s32.totalorder %s240, %s243
      %p252 = scmp.eq.s32.totalorder %s41, 3
      %p253 = por %p251, %p252
      %p254 = scmp.ne.s32.totalorder %s243, %s244
      %p255 = scmp.eq.s32.totalorder %s41, 0
      %p256 = por %p254, %p255
      %p257 = scmp.ne.s32.totalorder %s243, %s244
      %p258 = scmp.eq.s32.totalorder %s42, 3
      %p259 = por %p257, %p258
      %p261 = scmp.ne.s32.totalorder %s244, %s260
      %p262 = scmp.eq.s32.totalorder %s42, 0
      %p263 = por %p261, %p262
      %s264 = ssub.s32 %s44, %s51
      %p265 = scmp.eq.s32.totalorder %s264, 0
      %s267 = sadd.s32 %s266, 1
      %s268 = scalar_select %p265, %s266, %s267
      %p271 = pneg %p265
      %p272 = scmp.eq.s32.totalorder %s36, 3
      %p273 = por %p271, %p272
      %p274 = scmp.ne.s32.totalorder %s266, %s269
      %p275 = scmp.eq.s32.totalorder %s36, 0
      %p276 = por %p274, %p275
      %p277 = scmp.ne.s32.totalorder %s266, %s269
      %p278 = scmp.eq.s32.totalorder %s41, 3
      %p279 = por %p277, %p278
      %p280 = scmp.ne.s32.totalorder %s269, %s270
      %p281 = scmp.eq.s32.totalorder %s41, 0
      %p282 = por %p280, %p281
      %p283 = scmp.ne.s32.totalorder %s269, %s270
      %p284 = scmp.eq.s32.totalorder %s42, 3
      %p285 = por %p283, %p284
      %p287 = scmp.ne.s32.totalorder %s270, %s286
      %p288 = scmp.eq.s32.totalorder %s42, 0
      %p289 = por %p287, %p288
      %s290 = ssub.s32 %s44, %s51
      %p291 = scmp.eq.s32.totalorder %s290, 0
      %s293 = sadd.s32 %s292, 1
      %s294 = scalar_select %p291, %s292, %s293
      %p297 = pneg %p291
      %p298 = scmp.eq.s32.totalorder %s36, 3
      %p299 = por %p297, %p298
      %p300 = scmp.ne.s32.totalorder %s292, %s295
      %p301 = scmp.eq.s32.totalorder %s36, 0
      %p302 = por %p300, %p301
      %p303 = scmp.ne.s32.totalorder %s292, %s295
      %p304 = scmp.eq.s32.totalorder %s41, 3
      %p305 = por %p303, %p304
      %p306 = scmp.ne.s32.totalorder %s295, %s296
      %p307 = scmp.eq.s32.totalorder %s41, 0
      %p308 = por %p306, %p307
      %p309 = scmp.ne.s32.totalorder %s295, %s296
      %p310 = scmp.eq.s32.totalorder %s42, 3
      %p311 = por %p309, %p310
      %p313 = scmp.ne.s32.totalorder %s296, %s312
      %p314 = scmp.eq.s32.totalorder %s42, 0
      %p315 = por %p313, %p314
      %s316 = ssub.s32 %s44, %s51
      %p317 = scmp.eq.s32.totalorder %s316, 0
      %s319 = sadd.s32 %s318, 1
      %s320 = scalar_select %p317, %s318, %s319
      %p323 = pneg %p317
      %p324 = scmp.eq.s32.totalorder %s36, 3
      %p325 = por %p323, %p324
      %p326 = scmp.ne.s32.totalorder %s318, %s321
      %p327 = scmp.eq.s32.totalorder %s36, 0
      %p328 = por %p326, %p327
      %p329 = scmp.ne.s32.totalorder %s318, %s321
      %p330 = scmp.eq.s32.totalorder %s41, 3
      %p331 = por %p329, %p330
      %p332 = scmp.ne.s32.totalorder %s321, %s322
      %p333 = scmp.eq.s32.totalorder %s41, 0
      %p334 = por %p332, %p333
      %p335 = scmp.ne.s32.totalorder %s321, %s322
      %p336 = scmp.eq.s32.totalorder %s42, 3
      %p337 = por %p335, %p336
      %p339 = scmp.ne.s32.totalorder %s322, %s338
      %p340 = scmp.eq.s32.totalorder %s42, 0
      %p341 = por %p339, %p340
      %s342 = ssub.s32 %s44, %s51
      %p343 = scmp.eq.s32.totalorder %s342, 0
      %s345 = sadd.s32 %s344, 1
      %s346 = scalar_select %p343, %s344, %s345
      %p349 = pneg %p343
      %p350 = scmp.eq.s32.totalorder %s36, 3
      %p351 = por %p349, %p350
      %p352 = scmp.ne.s32.totalorder %s344, %s347
      %p353 = scmp.eq.s32.totalorder %s36, 0
      %p354 = por %p352, %p353
      %p355 = scmp.ne.s32.totalorder %s344, %s347
      %p356 = scmp.eq.s32.totalorder %s41, 3
      %p357 = por %p355, %p356
      %p358 = scmp.ne.s32.totalorder %s347, %s348
      %p359 = scmp.eq.s32.totalorder %s41, 0
      %p360 = por %p358, %p359
      %p361 = scmp.ne.s32.totalorder %s347, %s348
      %p362 = scmp.eq.s32.totalorder %s42, 3
      %p363 = por %p361, %p362
      %p365 = scmp.ne.s32.totalorder %s348, %s364
      %p366 = scmp.eq.s32.totalorder %s42, 0
      %p367 = por %p365, %p366
      %s368 = ssub.s32 %s44, %s51
      %p369 = scmp.eq.s32.totalorder %s368, 0
      %s371 = sadd.s32 %s370, 1
      %s372 = scalar_select %p369, %s370, %s371
      %p375 = pneg %p369
      %p376 = scmp.eq.s32.totalorder %s36, 3
      %p377 = por %p375, %p376
      %p378 = scmp.ne.s32.totalorder %s370, %s373
      %p379 = scmp.eq.s32.totalorder %s36, 0
      %p380 = por %p378, %p379
      %p381 = scmp.ne.s32.totalorder %s370, %s373
      %p382 = scmp.eq.s32.totalorder %s41, 3
      %p383 = por %p381, %p382
      %p384 = scmp.ne.s32.totalorder %s373, %s374
      %p385 = scmp.eq.s32.totalorder %s41, 0
      %p386 = por %p384, %p385
      %p387 = scmp.ne.s32.totalorder %s373, %s374
      %p388 = scmp.eq.s32.totalorder %s42, 3
      %p389 = por %p387, %p388
      %p391 = scmp.ne.s32.totalorder %s374, %s390
      %p392 = scmp.eq.s32.totalorder %s42, 0
      %p393 = por %p391, %p392
      %s394 = ssub.s32 %s44, %s51
      %p395 = scmp.eq.s32.totalorder %s394, 0
      %s397 = sadd.s32 %s396, 1
      %s398 = scalar_select %p395, %s396, %s397
      %p401 = pneg %p395
      %p402 = scmp.eq.s32.totalorder %s36, 3
      %p403 = por %p401, %p402
      %p404 = scmp.ne.s32.totalorder %s396, %s399
      %p405 = scmp.eq.s32.totalorder %s36, 0
      %p406 = por %p404, %p405
      %p407 = scmp.ne.s32.totalorder %s396, %s399
      %p408 = scmp.eq.s32.totalorder %s41, 3
      %p409 = por %p407, %p408
      %p410 = scmp.ne.s32.totalorder %s399, %s400
      %p411 = scmp.eq.s32.totalorder %s41, 0
      %p412 = por %p410, %p411
      %p413 = scmp.ne.s32.totalorder %s399, %s400
      %p414 = scmp.eq.s32.totalorder %s42, 3
      %p415 = por %p413, %p414
      %p417 = scmp.ne.s32.totalorder %s400, %s416
      %p418 = scmp.eq.s32.totalorder %s42, 0
      %p419 = por %p417, %p418
      %s420 = ssub.s32 %s44, %s51
      %p421 = scmp.eq.s32.totalorder %s420, 0
      %s423 = sadd.s32 %s422, 1
      %s424 = scalar_select %p421, %s422, %s423
      %p427 = pneg %p421
      %p428 = scmp.eq.s32.totalorder %s36, 3
      %p429 = por %p427, %p428
      %p430 = scmp.ne.s32.totalorder %s422, %s425
      %p431 = scmp.eq.s32.totalorder %s36, 0
      %p432 = por %p430, %p431
      %p433 = scmp.ne.s32.totalorder %s422, %s425
      %p434 = scmp.eq.s32.totalorder %s41, 3
      %p435 = por %p433, %p434
      %p436 = scmp.ne.s32.totalorder %s425, %s426
      %p437 = scmp.eq.s32.totalorder %s41, 0
      %p438 = por %p436, %p437
      %p439 = scmp.ne.s32.totalorder %s425, %s426
      %p440 = scmp.eq.s32.totalorder %s42, 3
      %p441 = por %p439, %p440
      %p443 = scmp.ne.s32.totalorder %s426, %s442
      %p444 = scmp.eq.s32.totalorder %s42, 0
      %p445 = por %p443, %p444
      %s446 = ssub.s32 %s44, %s51
      %p447 = scmp.eq.s32.totalorder %s446, 0
      %s449 = sadd.s32 %s448, 1
      %s450 = scalar_select %p447, %s448, %s449
      %p453 = pneg %p447
      %p454 = scmp.eq.s32.totalorder %s36, 3
      %p455 = por %p453, %p454
      %p456 = scmp.ne.s32.totalorder %s448, %s451
      %p457 = scmp.eq.s32.totalorder %s36, 0
      %p458 = por %p456, %p457
      %p459 = scmp.ne.s32.totalorder %s448, %s451
      %p460 = scmp.eq.s32.totalorder %s41, 3
      %p461 = por %p459, %p460
      %p462 = scmp.ne.s32.totalorder %s451, %s452
      %p463 = scmp.eq.s32.totalorder %s41, 0
      %p464 = por %p462, %p463
      %p465 = scmp.ne.s32.totalorder %s451, %s452
      %p466 = scmp.eq.s32.totalorder %s42, 3
      %p467 = por %p465, %p466
      %p469 = scmp.ne.s32.totalorder %s452, %s468
      %p470 = scmp.eq.s32.totalorder %s42, 0
      %p471 = por %p469, %p470
      %s472 = ssub.s32 %s44, %s51
      %p473 = scmp.eq.s32.totalorder %s472, 0
      %s475 = sadd.s32 %s474, 1
      %s476 = scalar_select %p473, %s474, %s475
      %p479 = pneg %p473
      %p480 = scmp.eq.s32.totalorder %s36, 3
      %p481 = por %p479, %p480
      %p482 = scmp.ne.s32.totalorder %s474, %s477
      %p483 = scmp.eq.s32.totalorder %s36, 0
      %p484 = por %p482, %p483
      %p485 = scmp.ne.s32.totalorder %s474, %s477
      %p486 = scmp.eq.s32.totalorder %s41, 3
      %p487 = por %p485, %p486
      %p488 = scmp.ne.s32.totalorder %s477, %s478
      %p489 = scmp.eq.s32.totalorder %s41, 0
      %p490 = por %p488, %p489
      %p491 = scmp.ne.s32.totalorder %s477, %s478
      %p492 = scmp.eq.s32.totalorder %s42, 3
      %p493 = por %p491, %p492
      %p495 = scmp.ne.s32.totalorder %s478, %s494
      %p496 = scmp.eq.s32.totalorder %s42, 0
      %p497 = por %p495, %p496
      %s498 = ssub.s32 %s44, %s51
      %p499 = scmp.eq.s32.totalorder %s498, 0
      %s501 = sadd.s32 %s500, 1
      %s502 = scalar_select %p499, %s500, %s501
      %p505 = pneg %p499
      %p506 = scmp.eq.s32.totalorder %s36, 3
      %p507 = por %p505, %p506
      %p508 = scmp.ne.s32.totalorder %s500, %s503
      %p509 = scmp.eq.s32.totalorder %s36, 0
      %p510 = por %p508, %p509
      %p511 = scmp.ne.s32.totalorder %s500, %s503
      %p512 = scmp.eq.s32.totalorder %s41, 3
      %p513 = por %p511, %p512
      %p514 = scmp.ne.s32.totalorder %s503, %s504
      %p515 = scmp.eq.s32.totalorder %s41, 0
      %p516 = por %p514, %p515
      %p517 = scmp.ne.s32.totalorder %s503, %s504
      %p518 = scmp.eq.s32.totalorder %s42, 3
      %p519 = por %p517, %p518
      %p521 = scmp.ne.s32.totalorder %s504, %s520
      %p522 = scmp.eq.s32.totalorder %s42, 0
      %p523 = por %p521, %p522
      %s524 = ssub.s32 %s43, %s55
      %p525 = scmp.eq.s32.totalorder %s524, 0
      %s527 = sadd.s32 %s526, 1
      %s528 = scalar_select %p525, %s526, %s527
      %p531 = pneg %p525
      %p532 = scmp.eq.s32.totalorder %s36, 3
      %p533 = por %p531, %p532
      %p534 = scmp.ne.s32.totalorder %s526, %s529
      %p535 = scmp.eq.s32.totalorder %s36, 0
      %p536 = por %p534, %p535
      %p537 = scmp.ne.s32.totalorder %s526, %s529
      %p538 = scmp.eq.s32.totalorder %s41, 3
      %p539 = por %p537, %p538
      %p540 = scmp.ne.s32.totalorder %s529, %s530
      %p541 = scmp.eq.s32.totalorder %s41, 0
      %p542 = por %p540, %p541
      %p543 = scmp.ne.s32.totalorder %s529, %s530
      %p544 = scmp.eq.s32.totalorder %s42, 3
      %p545 = por %p543, %p544
      %p547 = scmp.ne.s32.totalorder %s530, %s546
      %p548 = scmp.eq.s32.totalorder %s42, 0
      %p549 = por %p547, %p548
      %p550 = scmp.le.s32.totalorder 1, %s36
      %p551 = scmp.lt.s32.totalorder %s36, 5
      %p552 = pnand %p550, %p551
      %p553 = pneg %p552
      // Predicated region
      $region9: #{tpu_custom_call.1} parent=5 // pred_check
        _
      $region10: #{tpu_custom_call.1} parent=5 // pred_check_branch
        %555 = sbr.rel (%p552) target = $region12
      $region11: #{tpu_custom_call.1} parent=5 // pred_region
        %s556 = ssub.s32 %s36, 1
      $region12: #{tpu_custom_call.1} parent=5 // pred_fallthru
        _
      %p557 = scmp.lt.s32.totalorder %s36, 4
      // Predicated region
      $region13: #{tpu_custom_call.1} parent=5 // pred_check
        %p558 = pneg %p557
      $region14: #{tpu_custom_call.1} parent=5 // pred_check_branch
        %560 = sbr.rel (%p558) target = $region16
      $region15: #{tpu_custom_call.1} parent=5 // pred_region
        // Predicated region
        $region17: #{tpu_custom_call.1} parent=15 // pred_check
          %p561 = pneg %p68
        $region18: #{tpu_custom_call.1} parent=15 // pred_check_branch
          %563 = sbr.rel (%p561) target = $region20
        $region19: #{tpu_custom_call.1} parent=15 // pred_region
          %p564 = scmp.lt.s32.totalorder %s43, 1
          %s565 = scalar_select %p564, %s43, 1
          %s566 = smul.addr %s565, 2
          %s567 = smul.addr %s566, 8
          %s568 = scalar_lea.vmem %s0, %s567
        $region20: #{tpu_custom_call.1} parent=15 // pred_fallthru
          _
        // Predicated region
        $region21: #{tpu_custom_call.1} parent=15 // pred_check
          %p569 = pneg %p94
        $region22: #{tpu_custom_call.1} parent=15 // pred_check_branch
          %571 = sbr.rel (%p569) target = $region24
        $region23: #{tpu_custom_call.1} parent=15 // pred_region
          %s572 = sand.u32 %s84, 1
          %s573 = scalar_lea.sflag [#allocation7], %s572
          %s574 = sand.u32 %s84, 1
          %s575 = scalar_lea.vmem [#allocation6], %s574
          %s577 = ssub.s32 16, 16
          %578 = vsyncadd %s573, %s577
          %s579 = smul.addr %s43, 16
          %s580 = scalar_lea.hbm %s1, %s579
          %s582 = sshll.u32 %s575, 4
          %s583 = int_to_ptr.vmem [resolvable:$true] %s582
          %585 = dma.hbm_to_vmem [thread:$0]  %s580, 16, %s583, %s573
        $region24: #{tpu_custom_call.1} parent=15 // pred_fallthru
          _
        // Predicated region
        $region25: #{tpu_custom_call.1} parent=15 // pred_check
          %p586 = pneg %p120
        $region26: #{tpu_custom_call.1} parent=15 // pred_check_branch
          %588 = sbr.rel (%p586) target = $region28
        $region27: #{tpu_custom_call.1} parent=15 // pred_region
          %p589 = scmp.lt.s32.totalorder %s44, 1
          %s590 = scalar_select %p589, %s44, 1
          %s591 = smul.addr %s590, 4
          %s592 = smul.addr %s591, 4
          %s593 = scalar_lea.vmem %s2, %s592
        $region28: #{tpu_custom_call.1} parent=15 // pred_fallthru
          _
        // Predicated region
        $region29: #{tpu_custom_call.1} parent=15 // pred_check
          %p594 = pneg %p146
        $region30: #{tpu_custom_call.1} parent=15 // pred_check_branch
          %596 = sbr.rel (%p594) target = $region32
        $region31: #{tpu_custom_call.1} parent=15 // pred_region
          %p597 = scmp.lt.s32.totalorder %s44, 1
          %s598 = scalar_select %p597, %s44, 1
          %s599 = scalar_lea.vmem %s3, %s598
        $region32: #{tpu_custom_call.1} parent=15 // pred_fallthru
          _
        // Predicated region
        $region33: #{tpu_custom_call.1} parent=15 // pred_check
          %p600 = pneg %p172
        $region34: #{tpu_custom_call.1} parent=15 // pred_check_branch
          %602 = sbr.rel (%p600) target = $region36
        $region35: #{tpu_custom_call.1} parent=15 // pred_region
          %p603 = scmp.lt.s32.totalorder %s44, 1
          %s604 = scalar_select %p603, %s44, 1
          %s605 = smul.addr %s604, 4
          %s606 = smul.addr %s605, 4
          %s607 = scalar_lea.vmem %s4, %s606
        $region36: #{tpu_custom_call.1} parent=15 // pred_fallthru
          _
        // Predicated region
        $region37: #{tpu_custom_call.1} parent=15 // pred_check
          %p608 = pneg %p198
        $region38: #{tpu_custom_call.1} parent=15 // pred_check_branch
          %610 = sbr.rel (%p608) target = $region40
        $region39: #{tpu_custom_call.1} parent=15 // pred_region
          %p611 = scmp.lt.s32.totalorder %s44, 1
          %s612 = scalar_select %p611, %s44, 1
          %s613 = scalar_lea.vmem %s5, %s612
        $region40: #{tpu_custom_call.1} parent=15 // pred_fallthru
          _
        // Predicated region
        $region41: #{tpu_custom_call.1} parent=15 // pred_check
          %p614 = pneg %p224
        $region42: #{tpu_custom_call.1} parent=15 // pred_check_branch
          %616 = sbr.rel (%p614) target = $region44
        $region43: #{tpu_custom_call.1} parent=15 // pred_region
          %s617 = sand.u32 %s36, 1
          %s618 = scalar_lea.sflag [#allocation10], %s617
          %s619 = sand.u32 %s214, 1
          %s620 = smul.addr %s619, 16
          %s621 = scalar_lea.vmem [#allocation9], %s620
          %s623 = ssub.s32 256, 256
          %624 = vsyncadd %s618, %s623
          %s625 = smul.addr %s44, 4
          %s626 = smul.addr %s625, 64
          %s627 = scalar_lea.hbm %s6, %s626
          %s628 = sshll.u32 %s621, 4
          %s629 = int_to_ptr.vmem [resolvable:$true] %s628
          %634 = dma.hbm_to_vmem [thread:$0]  %s627, 256, %s629, %s618, 64, 64, 4
        $region44: #{tpu_custom_call.1} parent=15 // pred_fallthru
          _
        // Predicated region
        $region45: #{tpu_custom_call.1} parent=15 // pred_check
          %p635 = pneg %p250
        $region46: #{tpu_custom_call.1} parent=15 // pred_check_branch
          %637 = sbr.rel (%p635) target = $region48
        $region47: #{tpu_custom_call.1} parent=15 // pred_region
          %p638 = scmp.lt.s32.totalorder %s44, 1
          %s639 = scalar_select %p638, %s44, 1
          %s640 = scalar_lea.vmem %s7, %s639
        $region48: #{tpu_custom_call.1} parent=15 // pred_fallthru
          _
        // Predicated region
        $region49: #{tpu_custom_call.1} parent=15 // pred_check
          %p641 = pneg %p276
        $region50: #{tpu_custom_call.1} parent=15 // pred_check_branch
          %643 = sbr.rel (%p641) target = $region52
        $region51: #{tpu_custom_call.1} parent=15 // pred_region
          %s644 = sand.u32 %s36, 1
          %s645 = scalar_lea.sflag [#allocation10], %s644
          %s646 = sand.u32 %s266, 1
          %s647 = smul.addr %s646, 16
          %s648 = scalar_lea.vmem [#allocation11], %s647
          %s650 = ssub.s32 256, 256
          %651 = vsyncadd %s645, %s650
          %s652 = smul.addr %s44, 4
          %s653 = smul.addr %s652, 64
          %s654 = scalar_lea.hbm %s8, %s653
          %s655 = sshll.u32 %s648, 4
          %s656 = int_to_ptr.vmem [resolvable:$true] %s655
          %661 = dma.hbm_to_vmem [thread:$0]  %s654, 256, %s656, %s645, 64, 64, 4
        $region52: #{tpu_custom_call.1} parent=15 // pred_fallthru
          _
        // Predicated region
        $region53: #{tpu_custom_call.1} parent=15 // pred_check
          %p662 = pneg %p302
        $region54: #{tpu_custom_call.1} parent=15 // pred_check_branch
          %664 = sbr.rel (%p662) target = $region56
        $region55: #{tpu_custom_call.1} parent=15 // pred_region
          %p665 = scmp.lt.s32.totalorder %s44, 1
          %s666 = scalar_select %p665, %s44, 1
          %s667 = scalar_lea.vmem %s9, %s666
        $region56: #{tpu_custom_call.1} parent=15 // pred_fallthru
          _
        // Predicated region
        $region57: #{tpu_custom_call.1} parent=15 // pred_check
          %p668 = pneg %p328
        $region58: #{tpu_custom_call.1} parent=15 // pred_check_branch
          %670 = sbr.rel (%p668) target = $region60
        $region59: #{tpu_custom_call.1} parent=15 // pred_region
          %s671 = sand.u32 %s318, 1
          %s672 = scalar_lea.sflag [#allocation13], %s671
          %s673 = sand.u32 %s318, 1
          %s674 = smul.addr %s673, 16
          %s675 = scalar_lea.vmem [#allocation12], %s674
          %s677 = ssub.s32 256, 256
          %678 = vsyncadd %s672, %s677
          %s679 = smul.addr %s44, 4
          %s680 = smul.addr %s679, 64
          %s681 = scalar_lea.hbm %s10, %s680
          %s682 = sshll.u32 %s675, 4
          %s683 = int_to_ptr.vmem [resolvable:$true] %s682
          %688 = dma.hbm_to_vmem [thread:$0]  %s681, 256, %s683, %s672, 64, 64, 4
        $region60: #{tpu_custom_call.1} parent=15 // pred_fallthru
          _
        // Predicated region
        $region61: #{tpu_custom_call.1} parent=15 // pred_check
          %p689 = pneg %p354
        $region62: #{tpu_custom_call.1} parent=15 // pred_check_branch
          %691 = sbr.rel (%p689) target = $region64
        $region63: #{tpu_custom_call.1} parent=15 // pred_region
          %p692 = scmp.lt.s32.totalorder %s44, 1
          %s693 = scalar_select %p692, %s44, 1
          %s694 = scalar_lea.vmem %s11, %s693
        $region64: #{tpu_custom_call.1} parent=15 // pred_fallthru
          _
        // Predicated region
        $region65: #{tpu_custom_call.1} parent=15 // pred_check
          %p695 = pneg %p380
        $region66: #{tpu_custom_call.1} parent=15 // pred_check_branch
          %697 = sbr.rel (%p695) target = $region68
        $region67: #{tpu_custom_call.1} parent=15 // pred_region
          %p698 = scmp.lt.s32.totalorder %s44, 1
          %s699 = scalar_select %p698, %s44, 1
          %s700 = smul.addr %s699, 8
          %s701 = smul.addr %s700, 4
          %s702 = scalar_lea.vmem %s12, %s701
        $region68: #{tpu_custom_call.1} parent=15 // pred_fallthru
          _
        // Predicated region
        $region69: #{tpu_custom_call.1} parent=15 // pred_check
          %p703 = pneg %p406
        $region70: #{tpu_custom_call.1} parent=15 // pred_check_branch
          %705 = sbr.rel (%p703) target = $region72
        $region71: #{tpu_custom_call.1} parent=15 // pred_region
          %p706 = scmp.lt.s32.totalorder %s44, 1
          %s707 = scalar_select %p706, %s44, 1
          %s708 = scalar_lea.vmem %s13, %s707
        $region72: #{tpu_custom_call.1} parent=15 // pred_fallthru
          _
        // Predicated region
        $region73: #{tpu_custom_call.1} parent=15 // pred_check
          %p709 = pneg %p432
        $region74: #{tpu_custom_call.1} parent=15 // pred_check_branch
          %711 = sbr.rel (%p709) target = $region76
        $region75: #{tpu_custom_call.1} parent=15 // pred_region
          %p712 = scmp.lt.s32.totalorder %s44, 1
          %s713 = scalar_select %p712, %s44, 1
          %s714 = scalar_lea.vmem %s14, %s713
        $region76: #{tpu_custom_call.1} parent=15 // pred_fallthru
          _
        // Predicated region
        $region77: #{tpu_custom_call.1} parent=15 // pred_check
          %p715 = pneg %p458
        $region78: #{tpu_custom_call.1} parent=15 // pred_check_branch
          %717 = sbr.rel (%p715) target = $region80
        $region79: #{tpu_custom_call.1} parent=15 // pred_region
          %p718 = scmp.lt.s32.totalorder %s44, 1
          %s719 = scalar_select %p718, %s44, 1
          %s720 = scalar_lea.vmem %s15, %s719
        $region80: #{tpu_custom_call.1} parent=15 // pred_fallthru
          _
        // Predicated region
        $region81: #{tpu_custom_call.1} parent=15 // pred_check
          %p721 = pneg %p484
        $region82: #{tpu_custom_call.1} parent=15 // pred_check_branch
          %723 = sbr.rel (%p721) target = $region84
        $region83: #{tpu_custom_call.1} parent=15 // pred_region
          %p724 = scmp.lt.s32.totalorder %s44, 1
          %s725 = scalar_select %p724, %s44, 1
          %s726 = scalar_lea.vmem %s16, %s725
        $region84: #{tpu_custom_call.1} parent=15 // pred_fallthru
          _
        // Predicated region
        $region85: #{tpu_custom_call.1} parent=15 // pred_check
          %p727 = pneg %p510
        $region86: #{tpu_custom_call.1} parent=15 // pred_check_branch
          %729 = sbr.rel (%p727) target = $region88
        $region87: #{tpu_custom_call.1} parent=15 // pred_region
          %p730 = scmp.lt.s32.totalorder %s44, 1
          %s731 = scalar_select %p730, %s44, 1
          %s732 = scalar_lea.vmem %s17, %s731
        $region88: #{tpu_custom_call.1} parent=15 // pred_fallthru
          _
      $region16: #{tpu_custom_call.1} parent=5 // pred_fallthru
        _
      %p733 = scmp.le.s32.totalorder 1, %s36
      %p734 = scmp.lt.s32.totalorder %s36, 5
      %p735 = pnand %p733, %p734
      %p736 = pneg %p735
      // Predicated region
      $region89: #{tpu_custom_call.1} parent=5 // pred_check
        _
      $region90: #{tpu_custom_call.1} parent=5 // pred_check_branch
        %738 = sbr.rel (%p735) target = $region92
      $region91: #{tpu_custom_call.1} parent=5 // pred_region
        %s739 = ssub.s32 %s36, 1
        %s740 = sand.u32 %s87, 1
        %s741 = scalar_lea.sflag [#allocation7], %s740
        %s742 = sand.u32 %s87, 1
        %s743 = scalar_lea.vmem [#allocation6], %s742
        // Predicated region
        $region93: #{tpu_custom_call.1} parent=91 // pred_check
          %p744 = pneg %p100
        $region94: #{tpu_custom_call.1} parent=91 // pred_check_branch
          %746 = sbr.rel (%p744) target = $region96
        $region95: #{tpu_custom_call.1} parent=91 // pred_region
          %747 = dma.done %s741, 16
        $region96: #{tpu_custom_call.1} parent=91 // pred_fallthru
          _
        %s748 = sand.u32 %s41, 1
        %s749 = scalar_lea.sflag [#allocation10], %s748
        %s750 = sand.u32 %s217, 1
        %s751 = smul.addr %s750, 16
        %s752 = scalar_lea.vmem [#allocation9], %s751
        // Predicated region
        $region97: #{tpu_custom_call.1} parent=91 // pred_check
          %p753 = pneg %p230
        $region98: #{tpu_custom_call.1} parent=91 // pred_check_branch
          %755 = sbr.rel (%p753) target = $region100
        $region99: #{tpu_custom_call.1} parent=91 // pred_region
          %756 = dma.done %s749, 256
        $region100: #{tpu_custom_call.1} parent=91 // pred_fallthru
          _
        %s757 = sand.u32 %s41, 1
        %s758 = scalar_lea.sflag [#allocation10], %s757
        %s759 = sand.u32 %s269, 1
        %s760 = smul.addr %s759, 16
        %s761 = scalar_lea.vmem [#allocation11], %s760
        // Predicated region
        $region101: #{tpu_custom_call.1} parent=91 // pred_check
          %p762 = pneg %p282
        $region102: #{tpu_custom_call.1} parent=91 // pred_check_branch
          %764 = sbr.rel (%p762) target = $region104
        $region103: #{tpu_custom_call.1} parent=91 // pred_region
          %765 = dma.done %s758, 256
        $region104: #{tpu_custom_call.1} parent=91 // pred_fallthru
          _
        %s766 = sand.u32 %s321, 1
        %s767 = scalar_lea.sflag [#allocation13], %s766
        %s768 = sand.u32 %s321, 1
        %s769 = smul.addr %s768, 16
        %s770 = scalar_lea.vmem [#allocation12], %s769
        // Predicated region
        $region105: #{tpu_custom_call.1} parent=91 // pred_check
          %p771 = pneg %p334
        $region106: #{tpu_custom_call.1} parent=91 // pred_check_branch
          %773 = sbr.rel (%p771) target = $region108
        $region107: #{tpu_custom_call.1} parent=91 // pred_region
          %774 = dma.done %s767, 256
        $region108: #{tpu_custom_call.1} parent=91 // pred_fallthru
          _
        %p775 = scmp.lt.s32.totalorder %s45, 1
        %s776 = scalar_select %p775, %s45, 1
        %s777 = smul.addr %s776, 2
        %s778 = smul.addr %s777, 8
        %s779 = scalar_lea.vmem %s0, %s778
        %p780 = pneg %p74
        %p781 = pneg %p71
        %s782 = sand.u32 %s87, 1
        %s783 = scalar_lea.sflag [#allocation7], %s782
        %s784 = sand.u32 %s87, 1
        %s785 = scalar_lea.vmem [#allocation6], %s784
        %p786 = pneg %p100
        %p787 = pneg %p97
        %p788 = scmp.lt.s32.totalorder %s46, 1
        %s789 = scalar_select %p788, %s46, 1
        %s790 = smul.addr %s789, 4
        %s791 = smul.addr %s790, 4
        %s792 = scalar_lea.vmem %s2, %s791
        %p793 = pneg %p126
        %p794 = pneg %p123
        %p795 = scmp.lt.s32.totalorder %s46, 1
        %s796 = scalar_select %p795, %s46, 1
        %s797 = scalar_lea.vmem %s3, %s796
        %p798 = pneg %p152
        %p799 = pneg %p149
        %p800 = scmp.lt.s32.totalorder %s46, 1
        %s801 = scalar_select %p800, %s46, 1
        %s802 = smul.addr %s801, 4
        %s803 = smul.addr %s802, 4
        %s804 = scalar_lea.vmem %s4, %s803
        %p805 = pneg %p178
        %p806 = pneg %p175
        %p807 = scmp.lt.s32.totalorder %s46, 1
        %s808 = scalar_select %p807, %s46, 1
        %s809 = scalar_lea.vmem %s5, %s808
        %p810 = pneg %p204
        %p811 = pneg %p201
        %s812 = sand.u32 %s41, 1
        %s813 = scalar_lea.sflag [#allocation10], %s812
        %s814 = sand.u32 %s217, 1
        %s815 = smul.addr %s814, 16
        %s816 = scalar_lea.vmem [#allocation9], %s815
        %p817 = pneg %p230
        %p818 = pneg %p227
        %p819 = scmp.lt.s32.totalorder %s46, 1
        %s820 = scalar_select %p819, %s46, 1
        %s821 = scalar_lea.vmem %s7, %s820
        %p822 = pneg %p256
        %p823 = pneg %p253
        %s824 = sand.u32 %s41, 1
        %s825 = scalar_lea.sflag [#allocation10], %s824
        %s826 = sand.u32 %s269, 1
        %s827 = smul.addr %s826, 16
        %s828 = scalar_lea.vmem [#allocation11], %s827
        %p829 = pneg %p282
        %p830 = pneg %p279
        %p831 = scmp.lt.s32.totalorder %s46, 1
        %s832 = scalar_select %p831, %s46, 1
        %s833 = scalar_lea.vmem %s9, %s832
        %p834 = pneg %p308
        %p835 = pneg %p305
        %s836 = sand.u32 %s321, 1
        %s837 = scalar_lea.sflag [#allocation13], %s836
        %s838 = sand.u32 %s321, 1
        %s839 = smul.addr %s838, 16
        %s840 = scalar_lea.vmem [#allocation12], %s839
        %p841 = pneg %p334
        %p842 = pneg %p331
        %p843 = scmp.lt.s32.totalorder %s46, 1
        %s844 = scalar_select %p843, %s46, 1
        %s845 = scalar_lea.vmem %s11, %s844
        %p846 = pneg %p360
        %p847 = pneg %p357
        %p848 = scmp.lt.s32.totalorder %s46, 1
        %s849 = scalar_select %p848, %s46, 1
        %s850 = smul.addr %s849, 8
        %s851 = smul.addr %s850, 4
        %s852 = scalar_lea.vmem %s12, %s851
        %p853 = pneg %p386
        %p854 = pneg %p383
        %p855 = scmp.lt.s32.totalorder %s46, 1
        %s856 = scalar_select %p855, %s46, 1
        %s857 = scalar_lea.vmem %s13, %s856
        %p858 = pneg %p412
        %p859 = pneg %p409
        %p860 = scmp.lt.s32.totalorder %s46, 1
        %s861 = scalar_select %p860, %s46, 1
        %s862 = scalar_lea.vmem %s14, %s861
        %p863 = pneg %p438
        %p864 = pneg %p435
        %p865 = scmp.lt.s32.totalorder %s46, 1
        %s866 = scalar_select %p865, %s46, 1
        %s867 = scalar_lea.vmem %s15, %s866
        %p868 = pneg %p464
        %p869 = pneg %p461
        %p870 = scmp.lt.s32.totalorder %s46, 1
        %s871 = scalar_select %p870, %s46, 1
        %s872 = scalar_lea.vmem %s16, %s871
        %p873 = pneg %p490
        %p874 = pneg %p487
        %p875 = scmp.lt.s32.totalorder %s46, 1
        %s876 = scalar_select %p875, %s46, 1
        %s877 = scalar_lea.vmem %s17, %s876
        %p878 = pneg %p516
        %p879 = pneg %p513
        %p880 = pneg %p542
        %p881 = pneg %p539
        %s882 = sand.u32 %s529, 1
        %s883 = scalar_lea.sflag [#allocation8], %s882
        %s884 = sand.u32 %s529, 1
        %s885 = smul.addr %s884, 16
        %s886 = scalar_lea.vmem [#allocation14], %s885
        %p887 = scmp.lt.s32.totalorder %s45, 1
        %s888 = scalar_select %p887, %s45, 1
        %s889 = smul.addr %s888, 2
        %s890 = smul.addr %s889, 8
        %s891 = scalar_lea.vmem %s0, %s890
        %p892 = scmp.lt.s32.totalorder %s46, 1
        %s893 = scalar_select %p892, %s46, 1
        %s894 = smul.addr %s893, 4
        %s895 = smul.addr %s894, 4
        %s896 = scalar_lea.vmem %s2, %s895
        %p897 = scmp.lt.s32.totalorder %s46, 1
        %s898 = scalar_select %p897, %s46, 1
        %s899 = scalar_lea.vmem %s3, %s898
        %p900 = scmp.lt.s32.totalorder %s46, 1
        %s901 = scalar_select %p900, %s46, 1
        %s902 = smul.addr %s901, 4
        %s903 = smul.addr %s902, 4
        %s904 = scalar_lea.vmem %s4, %s903
        %p905 = scmp.lt.s32.totalorder %s46, 1
        %s906 = scalar_select %p905, %s46, 1
        %s907 = scalar_lea.vmem %s5, %s906
        %p908 = scmp.lt.s32.totalorder %s46, 1
        %s909 = scalar_select %p908, %s46, 1
        %s910 = scalar_lea.vmem %s7, %s909
        %p911 = scmp.lt.s32.totalorder %s46, 1
        %s912 = scalar_select %p911, %s46, 1
        %s913 = scalar_lea.vmem %s9, %s912
        %p914 = scmp.lt.s32.totalorder %s46, 1
        %s915 = scalar_select %p914, %s46, 1
        %s916 = scalar_lea.vmem %s11, %s915
        %p917 = scmp.lt.s32.totalorder %s46, 1
        %s918 = scalar_select %p917, %s46, 1
        %s919 = smul.addr %s918, 8
        %s920 = smul.addr %s919, 4
        %s921 = scalar_lea.vmem %s12, %s920
        %p922 = scmp.lt.s32.totalorder %s46, 1
        %s923 = scalar_select %p922, %s46, 1
        %s924 = scalar_lea.vmem %s13, %s923
        %p925 = scmp.lt.s32.totalorder %s46, 1
        %s926 = scalar_select %p925, %s46, 1
        %s927 = scalar_lea.vmem %s14, %s926
        %p928 = scmp.lt.s32.totalorder %s46, 1
        %s929 = scalar_select %p928, %s46, 1
        %s930 = scalar_lea.vmem %s15, %s929
        %p931 = scmp.lt.s32.totalorder %s46, 1
        %s932 = scalar_select %p931, %s46, 1
        %s933 = scalar_lea.vmem %s16, %s932
        %p934 = scmp.lt.s32.totalorder %s46, 1
        %s935 = scalar_select %p934, %s46, 1
        %s936 = scalar_lea.vmem %s17, %s935
        %p938 = scmp.eq.s32.totalorder %s46, 0
        // Predicated region
        $region109: #{tpu_custom_call.1} parent=91 // pred_check
          %p939 = pneg %p938
        $region110: #{tpu_custom_call.1} parent=91 // pred_check_branch
          %941 = sbr.rel (%p939) target = $region112
        $region111: #{tpu_custom_call.1} parent=91 // pred_region
          %v942 = vld [vmem:[%s891] sm:$0xff]
          %v943 = vld [vmem:[%s891 + $0x8] sm:$0xff]
          %vm944 = vcmask 261120
          %945 = vst.msk [vmem:[%s886] sm:$0xff] %vm944, %v942
          %946 = vst.msk [vmem:[%s886 + $0x8] sm:$0xff] %vm944, %v943
        $region112: #{tpu_custom_call.1} parent=91 // pred_fallthru
          _
        %v947 = vld [vmem:[%s886] sm:$0xff]
        %v948 = vld [vmem:[%s886 + $0x8] sm:$0xff]
        %v949 = vpack.c.bf16 %v948, %v947
        %v950 = vld [vmem:[%s743] sm:$0x1]
        %v951 = vld [vmem:[%s896] sm:$0xf]
        %v952 = vld [vmem:[%s896 + $0x4] sm:$0xf]
        %v953 = vld [vmem:[%s896 + $0x8] sm:$0xf]
        %v954 = vld [vmem:[%s896 + $0xc] sm:$0xf]
        %v955 = vld [vmem:[%s899] sm:$0x1]
        %v957 = vlaneseq
        %v958 = vshrl.u32 %v957, 7
        %v959 = vsub.s32 0, %v958
        %v960 = vrot.slane %v955, %v959
        %v966 = vunpack.c.l.b16 %v951
        %v967 = vunpack.c.l.b16 %v952
        %v968 = vunpack.c.l.b16 %v953
        %v969 = vunpack.c.l.b16 %v954
        %v970 = vpack.c.b16 %v967, %v966
        %v971 = vpack.c.b16 %v969, %v968
        %vm974 = vcmask 261120
        %v976 = vsel %vm974, %v949, 0
        %978 = vmatprep.subr.bf16.mxu0 0
        %979 = vmatpush1.bf16.msra.mxu0 0
        %980 = vmatprep.subr.bf16.mxu0 0
        %981 = vmatpush1.bf16.msra.mxu0 0
        %982 = vmatprep.subr.bf16.mxu0 0
        %983 = vmatpush1.bf16.msra.mxu0 0
        %984 = vmatprep.subr.bf16.mxu0 0
        %985 = vmatpush1.bf16.msra.mxu0 0
        %986 = vmatprep.subr.bf16.mxu0 0
        %987 = vmatpush1.bf16.msra.mxu0 0
        %988 = vmatprep.subr.bf16.mxu0 0
        %989 = vmatpush1.bf16.msra.mxu0 0
        %990 = vmatprep.subr.bf16.mxu0 0
        %991 = vmatpush1.bf16.msra.mxu0 %v971
        %992 = vmatprep.subr.bf16.mxu0 0
        %993 = vmatpush1.bf16.msra.mxu0 %v970
        %994 = vmatprep.subr.bf16.mxu0 0
        %995 = vmatpush2.bf16.msra.mxu0 0
        %996 = vmatprep.subr.bf16.mxu0 0
        %997 = vmatpush2.bf16.msra.mxu0 0
        %998 = vmatprep.subr.bf16.mxu0 0
        %999 = vmatpush2.bf16.msra.mxu0 0
        %1000 = vmatprep.subr.bf16.mxu0 0
        %1001 = vmatpush2.bf16.msra.mxu0 0
        %1002 = vmatprep.subr.bf16.mxu0 0
        %1003 = vmatpush2.bf16.msra.mxu0 0
        %1004 = vmatprep.subr.bf16.mxu0 0
        %1005 = vmatpush2.bf16.msra.mxu0 0
        %1006 = vmatprep.subr.bf16.mxu0 0
        %1007 = vmatpush2.bf16.msra.mxu0 0
        %1008 = vmatprep.subr.bf16.mxu0 0
        %1009 = vmatpush2.bf16.msra.mxu0 0
        %1010 = vmatprep.mubr.bf16.mxu0 0
        %1011 = vmatmul.mubr.bf16.gmra.mxu0 %v976
        %v1012 = vpop.f32.mrf.mxu0
        %v1013 = vadd.f32 %v960, %v1012
        %v1014 = vpop.f32.mrf.mxu0
        %v1015 = vpop.f32.mrf.mxu0
        %v1016 = vadd.f32 %v960, %v1015
        %v1017 = vpop.f32.mrf.mxu0
        %1018 = vdwg.mxu0
        %v1019 = vpack.c.bf16 %v1016, %v1013
        %v1021 = vunpack.c.l.b16 %v1019
        %v1022 = vunpack.c.h.b16 %v1019
        %v1023 = vpack.c.b16 %v1021, %v1021
        %v1024 = vpack.c.b16 %v1022, %v1022
        %vm1027 = vcmask 257024
        %1028 = vst.msk [vmem:[#allocation2] sm:$0xf] %vm1027, %v1023
        %1029 = vst.msk [vmem:[#allocation2 + $0x4] sm:$0xf] %vm1027, %v1024
        %v1030 = vld [vmem:[%s904] sm:$0xf]
        %v1031 = vld [vmem:[%s904 + $0x4] sm:$0xf]
        %v1032 = vld [vmem:[%s904 + $0x8] sm:$0xf]
        %v1033 = vld [vmem:[%s904 + $0xc] sm:$0xf]
        %v1034 = vld [vmem:[%s907] sm:$0x1]
        %v1036 = vlaneseq
        %v1037 = vshrl.u32 %v1036, 7
        %v1038 = vsub.s32 0, %v1037
        %v1039 = vrot.slane %v1034, %v1038
        %v1045 = vunpack.c.l.b16 %v1030
        %v1046 = vunpack.c.l.b16 %v1031
        %v1047 = vunpack.c.l.b16 %v1032
        %v1048 = vunpack.c.l.b16 %v1033
        %v1049 = vpack.c.b16 %v1046, %v1045
        %v1050 = vpack.c.b16 %v1048, %v1047
        %1053 = vmatprep.subr.bf16.mxu0 0
        %1054 = vmatpush1.bf16.msra.mxu0 0
        %1055 = vmatprep.subr.bf16.mxu0 0
        %1056 = vmatpush1.bf16.msra.mxu0 0
        %1057 = vmatprep.subr.bf16.mxu0 0
        %1058 = vmatpush1.bf16.msra.mxu0 0
        %1059 = vmatprep.subr.bf16.mxu0 0
        %1060 = vmatpush1.bf16.msra.mxu0 0
        %1061 = vmatprep.subr.bf16.mxu0 0
        %1062 = vmatpush1.bf16.msra.mxu0 0
        %1063 = vmatprep.subr.bf16.mxu0 0
        %1064 = vmatpush1.bf16.msra.mxu0 0
        %1065 = vmatprep.subr.bf16.mxu0 0
        %1066 = vmatpush1.bf16.msra.mxu0 %v1050
        %1067 = vmatprep.subr.bf16.mxu0 0
        %1068 = vmatpush1.bf16.msra.mxu0 %v1049
        %1069 = vmatprep.subr.bf16.mxu0 0
        %1070 = vmatpush2.bf16.msra.mxu0 0
        %1071 = vmatprep.subr.bf16.mxu0 0
        %1072 = vmatpush2.bf16.msra.mxu0 0
        %1073 = vmatprep.subr.bf16.mxu0 0
        %1074 = vmatpush2.bf16.msra.mxu0 0
        %1075 = vmatprep.subr.bf16.mxu0 0
        %1076 = vmatpush2.bf16.msra.mxu0 0
        %1077 = vmatprep.subr.bf16.mxu0 0
        %1078 = vmatpush2.bf16.msra.mxu0 0
        %1079 = vmatprep.subr.bf16.mxu0 0
        %1080 = vmatpush2.bf16.msra.mxu0 0
        %1081 = vmatprep.subr.bf16.mxu0 0
        %1082 = vmatpush2.bf16.msra.mxu0 0
        %1083 = vmatprep.subr.bf16.mxu0 0
        %1084 = vmatpush2.bf16.msra.mxu0 0
        %1085 = vmatprep.mubr.bf16.mxu0 0
        %1086 = vmatmul.mubr.bf16.gmra.mxu0 %v976
        %v1087 = vpop.f32.mrf.mxu0
        %v1088 = vadd.f32 %v1039, %v1087
        %v1089 = vpop.f32.mrf.mxu0
        %v1090 = vpop.f32.mrf.mxu0
        %v1091 = vadd.f32 %v1039, %v1090
        %v1092 = vpop.f32.mrf.mxu0
        %1093 = vdwg.mxu0
        %v1094 = vpack.c.bf16 %v1091, %v1088
        %v1096 = vunpack.c.l.b16 %v1094
        %v1097 = vunpack.c.h.b16 %v1094
        %v1098 = vpack.c.b16 %v1096, %v1096
        %v1099 = vpack.c.b16 %v1097, %v1097
        %1102 = vst.msk [vmem:[#allocation3] sm:$0xf] %vm1027, %v1098
        %1103 = vst.msk [vmem:[#allocation3 + $0x4] sm:$0xf] %vm1027, %v1099
        %v1104 = vld [vmem:[%s752] sm:$0xf]
        %v1105 = vld [vmem:[%s752 + $0x4] sm:$0xf]
        %v1106 = vld [vmem:[%s752 + $0x8] sm:$0xf]
        %v1107 = vld [vmem:[%s752 + $0xc] sm:$0xf]
        %v1108 = vld [vmem:[%s910] sm:$0x1]
        %v1110 = vlaneseq
        %v1111 = vshrl.u32 %v1110, 7
        %v1112 = vsub.s32 0, %v1111
        %v1113 = vrot.slane %v1108, %v1112
        %v1119 = vunpack.c.l.b16 %v1104
        %v1120 = vunpack.c.l.b16 %v1105
        %v1121 = vunpack.c.l.b16 %v1106
        %v1122 = vunpack.c.l.b16 %v1107
        %v1123 = vpack.c.b16 %v1120, %v1119
        %v1124 = vpack.c.b16 %v1122, %v1121
        %1127 = vmatprep.subr.bf16.mxu0 0
        %1128 = vmatpush1.bf16.msra.mxu0 0
        %1129 = vmatprep.subr.bf16.mxu0 0
        %1130 = vmatpush1.bf16.msra.mxu0 0
        %1131 = vmatprep.subr.bf16.mxu0 0
        %1132 = vmatpush1.bf16.msra.mxu0 0
        %1133 = vmatprep.subr.bf16.mxu0 0
        %1134 = vmatpush1.bf16.msra.mxu0 0
        %1135 = vmatprep.subr.bf16.mxu0 0
        %1136 = vmatpush1.bf16.msra.mxu0 0
        %1137 = vmatprep.subr.bf16.mxu0 0
        %1138 = vmatpush1.bf16.msra.mxu0 0
        %1139 = vmatprep.subr.bf16.mxu0 0
        %1140 = vmatpush1.bf16.msra.mxu0 %v1124
        %1141 = vmatprep.subr.bf16.mxu0 0
        %1142 = vmatpush1.bf16.msra.mxu0 %v1123
        %1143 = vmatprep.subr.bf16.mxu0 0
        %1144 = vmatpush2.bf16.msra.mxu0 0
        %1145 = vmatprep.subr.bf16.mxu0 0
        %1146 = vmatpush2.bf16.msra.mxu0 0
        %1147 = vmatprep.subr.bf16.mxu0 0
        %1148 = vmatpush2.bf16.msra.mxu0 0
        %1149 = vmatprep.subr.bf16.mxu0 0
        %1150 = vmatpush2.bf16.msra.mxu0 0
        %1151 = vmatprep.subr.bf16.mxu0 0
        %1152 = vmatpush2.bf16.msra.mxu0 0
        %1153 = vmatprep.subr.bf16.mxu0 0
        %1154 = vmatpush2.bf16.msra.mxu0 0
        %1155 = vmatprep.subr.bf16.mxu0 0
        %1156 = vmatpush2.bf16.msra.mxu0 0
        %1157 = vmatprep.subr.bf16.mxu0 0
        %1158 = vmatpush2.bf16.msra.mxu0 0
        %1159 = vmatprep.mubr.bf16.mxu0 0
        %1160 = vmatmul.mubr.bf16.gmra.mxu0 %v976
        %v1161 = vpop.f32.mrf.mxu0
        %v1162 = vadd.f32 %v1113, %v1161
        %v1163 = vpop.f32.mrf.mxu0
        %v1164 = vpop.f32.mrf.mxu0
        %v1165 = vadd.f32 %v1113, %v1164
        %v1166 = vpop.f32.mrf.mxu0
        %1167 = vdwg.mxu0
        %v1168 = vpack.c.bf16 %v1165, %v1162
        %v1170 = vunpack.c.l.b16 %v1168
        %v1171 = vunpack.c.h.b16 %v1168
        %v1172 = vpack.c.b16 %v1170, %v1170
        %v1173 = vpack.c.b16 %v1171, %v1171
        %1176 = vst.msk [vmem:[#allocation4] sm:$0xf] %vm1027, %v1172
        %1177 = vst.msk [vmem:[#allocation4 + $0x4] sm:$0xf] %vm1027, %v1173
        %v1178 = vld [vmem:[#allocation2] sm:$0xf]
        %v1179 = vld [vmem:[#allocation2 + $0x4] sm:$0xf]
        %v1180 = vld [vmem:[#allocation3] sm:$0xf]
        %v1181 = vld [vmem:[#allocation3 + $0x4] sm:$0xf]
        %v1182 = vld [vmem:[#allocation4] sm:$0xf]
        %v1183 = vld [vmem:[#allocation4 + $0x4] sm:$0xf]
        %v1185 = vlaneseq
        %v1186 = vshrl.u32 %v1185, 7
        %v1187 = vsub.s32 0, %v1186
        %v1188 = vrot.slane %v950, %v1187
        %v1192 = vunpack.c.l.b16 %v1178
        %v1193 = vunpack.c.l.b16 %v1179
        %v1194 = vpack.c.b16 %v1193, %v1192
        %v1197 = vunpack.c.l.b16 %v1180
        %v1198 = vunpack.c.l.b16 %v1181
        %v1199 = vpack.c.b16 %v1198, %v1197
        %vm1200 = vcmask 64512
        %v1202 = vsel %vm1200, %v1194, 0
        %v1205 = vsel %vm1200, %v1199, 0
        %1207 = vmatprep.subr.bf16.mxu0 0
        %1208 = vmatpush1.bf16.xpose.msra.mxu0 0
        %1209 = vmatprep.subr.bf16.mxu0 0
        %1210 = vmatpush1.bf16.xpose.msra.mxu0 0
        %1211 = vmatprep.subr.bf16.mxu0 0
        %1212 = vmatpush1.bf16.xpose.msra.mxu0 0
        %1213 = vmatprep.subr.bf16.mxu0 0
        %1214 = vmatpush1.bf16.xpose.msra.mxu0 0
        %1215 = vmatprep.subr.bf16.mxu0 0
        %1216 = vmatpush1.bf16.xpose.msra.mxu0 0
        %1217 = vmatprep.subr.bf16.mxu0 0
        %1218 = vmatpush1.bf16.xpose.msra.mxu0 0
        %1219 = vmatprep.subr.bf16.mxu0 0
        %1220 = vmatpush1.bf16.xpose.msra.mxu0 0
        %1221 = vmatprep.subr.bf16.mxu0 0
        %1222 = vmatpush1.bf16.xpose.msra.mxu0 %v1205
        %1223 = vmatprep.subr.bf16.mxu0 0
        %1224 = vmatpush2.bf16.xpose.msra.mxu0 0
        %1225 = vmatprep.subr.bf16.mxu0 0
        %1226 = vmatpush2.bf16.xpose.msra.mxu0 0
        %1227 = vmatprep.subr.bf16.mxu0 0
        %1228 = vmatpush2.bf16.xpose.msra.mxu0 0
        %1229 = vmatprep.subr.bf16.mxu0 0
        %1230 = vmatpush2.bf16.xpose.msra.mxu0 0
        %1231 = vmatprep.subr.bf16.mxu0 0
        %1232 = vmatpush2.bf16.xpose.msra.mxu0 0
        %1233 = vmatprep.subr.bf16.mxu0 0
        %1234 = vmatpush2.bf16.xpose.msra.mxu0 0
        %1235 = vmatprep.subr.bf16.mxu0 0
        %1236 = vmatpush2.bf16.xpose.msra.mxu0 0
        %1237 = vmatprep.subr.bf16.mxu0 0
        %1238 = vmatpush2.bf16.xpose.msra.mxu0 0
        %1239 = vmatprep.mubr.bf16.mxu0 0
        %1240 = vmatmul.mubr.bf16.gmra.mxu0 %v1202
        %v1241 = vpop.f32.mrf.mxu0
        %v1242 = vadd.f32 %v1188, %v1241
        %v1243 = vpop.f32.mrf.mxu0
        %v1244 = vpop.f32.mrf.mxu0
        %v1245 = vadd.f32 %v1188, %v1244
        %v1246 = vpop.f32.mrf.mxu0
        %1247 = vdwg.mxu0
        %vm1248 = vcmask 130048
        %v1249 = vsel %vm1248, %v1242, -inf
        %1250 = vmax.xlane.f32.xlu0 %v1249
        %v1251 = vpop.xlane.xlu0 %1250
        %v1252 = vsel %vm1248, %v1245, -inf
        %1253 = vmax.xlane.f32.xlu0 %v1252
        %v1254 = vpop.xlane.xlu0 %1253
        %v1255 = vsub.f32 %v1242, %v1251
        %v1256 = vsub.f32 %v1245, %v1254
        %v1257 = vmul.f32 %v1255, 1.442695
        %v1258 = vpow.pop %v1257
        %v1259 = vmul.f32 %v1256, 1.442695
        %v1260 = vpow.pop %v1259
        %v1261 = vsel %vm1248, %v1258, 0.0
        %1262 = vadd.xlane.f32.xlu0 %v1261
        %v1263 = vpop.xlane.xlu0 %1262
        %v1264 = vsel %vm1248, %v1260, 0.0
        %1265 = vadd.xlane.f32.xlu0 %v1264
        %v1266 = vpop.xlane.xlu0 %1265
        %v1267 = vrcp.pop %v1263
        %v1268 = vrcp.pop %v1266
        %v1269 = vmul.f32 %v1258, %v1267
        %v1270 = vmul.f32 %v1260, %v1268
        %v1271 = vpack.c.bf16 %v1270, %v1269
        %v1274 = vunpack.c.l.b16 %v1182
        %v1275 = vunpack.c.l.b16 %v1183
        %v1276 = vpack.c.b16 %v1275, %v1274
        %v1279 = vsel %vm1248, %v1271, 0
        %1281 = vmatprep.subr.bf16.mxu0 0
        %1282 = vmatpush1.bf16.msra.mxu0 0
        %1283 = vmatprep.subr.bf16.mxu0 0
        %1284 = vmatpush1.bf16.msra.mxu0 0
        %1285 = vmatprep.subr.bf16.mxu0 0
        %1286 = vmatpush1.bf16.msra.mxu0 0
        %1287 = vmatprep.subr.bf16.mxu0 0
        %1288 = vmatpush1.bf16.msra.mxu0 0
        %1289 = vmatprep.subr.bf16.mxu0 0
        %1290 = vmatpush1.bf16.msra.mxu0 0
        %1291 = vmatprep.subr.bf16.mxu0 0
        %1292 = vmatpush1.bf16.msra.mxu0 0
        %1293 = vmatprep.subr.bf16.mxu0 0
        %1294 = vmatpush1.bf16.msra.mxu0 0
        %1295 = vmatprep.subr.bf16.mxu0 0
        %1296 = vmatpush1.bf16.msra.mxu0 %v1276
        %1297 = vmatprep.subr.bf16.mxu0 0
        %1298 = vmatpush2.bf16.msra.mxu0 0
        %1299 = vmatprep.subr.bf16.mxu0 0
        %1300 = vmatpush2.bf16.msra.mxu0 0
        %1301 = vmatprep.subr.bf16.mxu0 0
        %1302 = vmatpush2.bf16.msra.mxu0 0
        %1303 = vmatprep.subr.bf16.mxu0 0
        %1304 = vmatpush2.bf16.msra.mxu0 0
        %1305 = vmatprep.subr.bf16.mxu0 0
        %1306 = vmatpush2.bf16.msra.mxu0 0
        %1307 = vmatprep.subr.bf16.mxu0 0
        %1308 = vmatpush2.bf16.msra.mxu0 0
        %1309 = vmatprep.subr.bf16.mxu0 0
        %1310 = vmatpush2.bf16.msra.mxu0 0
        %1311 = vmatprep.subr.bf16.mxu0 0
        %1312 = vmatpush2.bf16.msra.mxu0 0
        %1313 = vmatprep.mubr.bf16.mxu0 0
        %1314 = vmatmul.mubr.bf16.gmra.mxu0 %v1279
        %v1315 = vpop.f32.mrf.mxu0
        %v1316 = vadd.f32 0.0, %v1315
        %v1317 = vpop.f32.mrf.mxu0
        %v1318 = vpop.f32.mrf.mxu0
        %v1319 = vadd.f32 0.0, %v1318
        %v1320 = vpop.f32.mrf.mxu0
        %1321 = vdwg.mxu0
        %v1322 = vpack.c.bf16 %v1319, %v1316
        %v1324 = vunpack.c.l.b16 %v1322
        %v1325 = vunpack.c.h.b16 %v1322
        %v1326 = vpack.c.b16 %v1324, %v1324
        %v1327 = vpack.c.b16 %v1325, %v1325
        %vm1330 = vcmask 60416
        %1331 = vst.msk [vmem:[#allocation5] sm:$0xf] %vm1330, %v1326
        %1332 = vst.msk [vmem:[#allocation5 + $0x4] sm:$0xf] %vm1330, %v1327
        %v1333 = vld [vmem:[#allocation2] sm:$0xf]
        %v1334 = vld [vmem:[#allocation2 + $0x4] sm:$0xf]
        %v1335 = vld [vmem:[#allocation3] sm:$0xf]
        %v1336 = vld [vmem:[#allocation3 + $0x4] sm:$0xf]
        %v1337 = vld [vmem:[#allocation4] sm:$0xf]
        %v1338 = vld [vmem:[#allocation4 + $0x4] sm:$0xf]
        %v1341 = vunpack.c.l.b16 %v1333
        %v1342 = vunpack.c.l.b16 %v1334
        %v1343 = vpack.c.b16 %v1342, %v1341
        %1344 = vrot.lane.b32.xlu0 %v1343, 120
        %v1345 = vpop.permute.xlu0 %1344
        %v1348 = vunpack.c.l.b16 %v1335
        %v1349 = vunpack.c.l.b16 %v1336
        %v1350 = vpack.c.b16 %v1349, %v1348
        %1351 = vrot.lane.b32.xlu0 %v1350, 120
        %v1352 = vpop.permute.xlu0 %1351
        %v1354 = vsel %vm1200, %v1345, 0
        %v1357 = vsel %vm1200, %v1352, 0
        %1359 = vmatprep.subr.bf16.mxu0 0
        %1360 = vmatpush1.bf16.xpose.msra.mxu0 0
        %1361 = vmatprep.subr.bf16.mxu0 0
        %1362 = vmatpush1.bf16.xpose.msra.mxu0 0
        %1363 = vmatprep.subr.bf16.mxu0 0
        %1364 = vmatpush1.bf16.xpose.msra.mxu0 0
        %1365 = vmatprep.subr.bf16.mxu0 0
        %1366 = vmatpush1.bf16.xpose.msra.mxu0 0
        %1367 = vmatprep.subr.bf16.mxu0 0
        %1368 = vmatpush1.bf16.xpose.msra.mxu0 0
        %1369 = vmatprep.subr.bf16.mxu0 0
        %1370 = vmatpush1.bf16.xpose.msra.mxu0 0
        %1371 = vmatprep.subr.bf16.mxu0 0
        %1372 = vmatpush1.bf16.xpose.msra.mxu0 0
        %1373 = vmatprep.subr.bf16.mxu0 0
        %1374 = vmatpush1.bf16.xpose.msra.mxu0 %v1357
        %1375 = vmatprep.subr.bf16.mxu0 0
        %1376 = vmatpush2.bf16.xpose.msra.mxu0 0
        %1377 = vmatprep.subr.bf16.mxu0 0
        %1378 = vmatpush2.bf16.xpose.msra.mxu0 0
        %1379 = vmatprep.subr.bf16.mxu0 0
        %1380 = vmatpush2.bf16.xpose.msra.mxu0 0
        %1381 = vmatprep.subr.bf16.mxu0 0
        %1382 = vmatpush2.bf16.xpose.msra.mxu0 0
        %1383 = vmatprep.subr.bf16.mxu0 0
        %1384 = vmatpush2.bf16.xpose.msra.mxu0 0
        %1385 = vmatprep.subr.bf16.mxu0 0
        %1386 = vmatpush2.bf16.xpose.msra.mxu0 0
        %1387 = vmatprep.subr.bf16.mxu0 0
        %1388 = vmatpush2.bf16.xpose.msra.mxu0 0
        %1389 = vmatprep.subr.bf16.mxu0 0
        %1390 = vmatpush2.bf16.xpose.msra.mxu0 0
        %1391 = vmatprep.mubr.bf16.mxu0 0
        %1392 = vmatmul.mubr.bf16.gmra.mxu0 %v1354
        %v1393 = vpop.f32.mrf.mxu0
        %v1394 = vadd.f32 %v1188, %v1393
        %v1395 = vpop.f32.mrf.mxu0
        %v1396 = vpop.f32.mrf.mxu0
        %v1397 = vadd.f32 %v1188, %v1396
        %v1398 = vpop.f32.mrf.mxu0
        %1399 = vdwg.mxu0
        %v1400 = vsel %vm1248, %v1394, -inf
        %1401 = vmax.xlane.f32.xlu0 %v1400
        %v1402 = vpop.xlane.xlu0 %1401
        %v1403 = vsel %vm1248, %v1397, -inf
        %1404 = vmax.xlane.f32.xlu0 %v1403
        %v1405 = vpop.xlane.xlu0 %1404
        %v1406 = vsub.f32 %v1394, %v1402
        %v1407 = vsub.f32 %v1397, %v1405
        %v1408 = vmul.f32 %v1406, 1.442695
        %v1409 = vpow.pop %v1408
        %v1410 = vmul.f32 %v1407, 1.442695
        %v1411 = vpow.pop %v1410
        %v1412 = vsel %vm1248, %v1409, 0.0
        %1413 = vadd.xlane.f32.xlu0 %v1412
        %v1414 = vpop.xlane.xlu0 %1413
        %v1415 = vsel %vm1248, %v1411, 0.0
        %1416 = vadd.xlane.f32.xlu0 %v1415
        %v1417 = vpop.xlane.xlu0 %1416
        %v1418 = vrcp.pop %v1414
        %v1419 = vrcp.pop %v1417
        %v1420 = vmul.f32 %v1409, %v1418
        %v1421 = vmul.f32 %v1411, %v1419
        %v1422 = vpack.c.bf16 %v1421, %v1420
        %v1425 = vunpack.c.l.b16 %v1337
        %v1426 = vunpack.c.l.b16 %v1338
        %v1427 = vpack.c.b16 %v1426, %v1425
        %1428 = vrot.lane.b32.xlu0 %v1427, 120
        %v1429 = vpop.permute.xlu0 %1428
        %v1432 = vsel %vm1248, %v1422, 0
        %1434 = vmatprep.subr.bf16.mxu0 0
        %1435 = vmatpush1.bf16.msra.mxu0 0
        %1436 = vmatprep.subr.bf16.mxu0 0
        %1437 = vmatpush1.bf16.msra.mxu0 0
        %1438 = vmatprep.subr.bf16.mxu0 0
        %1439 = vmatpush1.bf16.msra.mxu0 0
        %1440 = vmatprep.subr.bf16.mxu0 0
        %1441 = vmatpush1.bf16.msra.mxu0 0
        %1442 = vmatprep.subr.bf16.mxu0 0
        %1443 = vmatpush1.bf16.msra.mxu0 0
        %1444 = vmatprep.subr.bf16.mxu0 0
        %1445 = vmatpush1.bf16.msra.mxu0 0
        %1446 = vmatprep.subr.bf16.mxu0 0
        %1447 = vmatpush1.bf16.msra.mxu0 0
        %1448 = vmatprep.subr.bf16.mxu0 0
        %1449 = vmatpush1.bf16.msra.mxu0 %v1429
        %1450 = vmatprep.subr.bf16.mxu0 0
        %1451 = vmatpush2.bf16.msra.mxu0 0
        %1452 = vmatprep.subr.bf16.mxu0 0
        %1453 = vmatpush2.bf16.msra.mxu0 0
        %1454 = vmatprep.subr.bf16.mxu0 0
        %1455 = vmatpush2.bf16.msra.mxu0 0
        %1456 = vmatprep.subr.bf16.mxu0 0
        %1457 = vmatpush2.bf16.msra.mxu0 0
        %1458 = vmatprep.subr.bf16.mxu0 0
        %1459 = vmatpush2.bf16.msra.mxu0 0
        %1460 = vmatprep.subr.bf16.mxu0 0
        %1461 = vmatpush2.bf16.msra.mxu0 0
        %1462 = vmatprep.subr.bf16.mxu0 0
        %1463 = vmatpush2.bf16.msra.mxu0 0
        %1464 = vmatprep.subr.bf16.mxu0 0
        %1465 = vmatpush2.bf16.msra.mxu0 0
        %1466 = vmatprep.mubr.bf16.mxu0 0
        %1467 = vmatmul.mubr.bf16.gmra.mxu0 %v1432
        %v1468 = vpop.f32.mrf.mxu0
        %v1469 = vadd.f32 0.0, %v1468
        %v1470 = vpop.f32.mrf.mxu0
        %v1471 = vpop.f32.mrf.mxu0
        %v1472 = vadd.f32 0.0, %v1471
        %v1473 = vpop.f32.mrf.mxu0
        %1474 = vdwg.mxu0
        %v1475 = vpack.c.bf16 %v1472, %v1469
        %v1477 = vunpack.c.l.b16 %v1475
        %v1478 = vunpack.c.h.b16 %v1475
        %v1479 = vpack.c.b16 %v1477, %v1477
        %v1480 = vpack.c.b16 %v1478, %v1478
        %1481 = vrot.lane.b32.xlu0 %v1479, 8
        %v1482 = vpop.permute.xlu0 %1481
        %1483 = vrot.lane.b32.xlu0 %v1480, 8
        %v1484 = vpop.permute.xlu0 %1483
        %vm1487 = vcmask 126016
        %1488 = vst.msk [vmem:[#allocation5] sm:$0xf] %vm1487, %v1482
        %1489 = vst.msk [vmem:[#allocation5 + $0x4] sm:$0xf] %vm1487, %v1484
        %v1490 = vld [vmem:[#allocation2] sm:$0xf]
        %v1491 = vld [vmem:[#allocation2 + $0x4] sm:$0xf]
        %v1492 = vld [vmem:[#allocation3] sm:$0xf]
        %v1493 = vld [vmem:[#allocation3 + $0x4] sm:$0xf]
        %v1494 = vld [vmem:[#allocation4] sm:$0xf]
        %v1495 = vld [vmem:[#allocation4 + $0x4] sm:$0xf]
        %v1498 = vunpack.c.l.b16 %v1490
        %v1499 = vunpack.c.l.b16 %v1491
        %v1500 = vpack.c.b16 %v1499, %v1498
        %1501 = vrot.lane.b32.xlu0 %v1500, 112
        %v1502 = vpop.permute.xlu0 %1501
        %v1505 = vunpack.c.l.b16 %v1492
        %v1506 = vunpack.c.l.b16 %v1493
        %v1507 = vpack.c.b16 %v1506, %v1505
        %1508 = vrot.lane.b32.xlu0 %v1507, 112
        %v1509 = vpop.permute.xlu0 %1508
        %v1511 = vsel %vm1200, %v1502, 0
        %v1514 = vsel %vm1200, %v1509, 0
        %1516 = vmatprep.subr.bf16.mxu0 0
        %1517 = vmatpush1.bf16.xpose.msra.mxu0 0
        %1518 = vmatprep.subr.bf16.mxu0 0
        %1519 = vmatpush1.bf16.xpose.msra.mxu0 0
        %1520 = vmatprep.subr.bf16.mxu0 0
        %1521 = vmatpush1.bf16.xpose.msra.mxu0 0
        %1522 = vmatprep.subr.bf16.mxu0 0
        %1523 = vmatpush1.bf16.xpose.msra.mxu0 0
        %1524 = vmatprep.subr.bf16.mxu0 0
        %1525 = vmatpush1.bf16.xpose.msra.mxu0 0
        %1526 = vmatprep.subr.bf16.mxu0 0
        %1527 = vmatpush1.bf16.xpose.msra.mxu0 0
        %1528 = vmatprep.subr.bf16.mxu0 0
        %1529 = vmatpush1.bf16.xpose.msra.mxu0 0
        %1530 = vmatprep.subr.bf16.mxu0 0
        %1531 = vmatpush1.bf16.xpose.msra.mxu0 %v1514
        %1532 = vmatprep.subr.bf16.mxu0 0
        %1533 = vmatpush2.bf16.xpose.msra.mxu0 0
        %1534 = vmatprep.subr.bf16.mxu0 0
        %1535 = vmatpush2.bf16.xpose.msra.mxu0 0
        %1536 = vmatprep.subr.bf16.mxu0 0
        %1537 = vmatpush2.bf16.xpose.msra.mxu0 0
        %1538 = vmatprep.subr.bf16.mxu0 0
        %1539 = vmatpush2.bf16.xpose.msra.mxu0 0
        %1540 = vmatprep.subr.bf16.mxu0 0
        %1541 = vmatpush2.bf16.xpose.msra.mxu0 0
        %1542 = vmatprep.subr.bf16.mxu0 0
        %1543 = vmatpush2.bf16.xpose.msra.mxu0 0
        %1544 = vmatprep.subr.bf16.mxu0 0
        %1545 = vmatpush2.bf16.xpose.msra.mxu0 0
        %1546 = vmatprep.subr.bf16.mxu0 0
        %1547 = vmatpush2.bf16.xpose.msra.mxu0 0
        %1548 = vmatprep.mubr.bf16.mxu0 0
        %1549 = vmatmul.mubr.bf16.gmra.mxu0 %v1511
        %v1550 = vpop.f32.mrf.mxu0
        %v1551 = vadd.f32 %v1188, %v1550
        %v1552 = vpop.f32.mrf.mxu0
        %v1553 = vpop.f32.mrf.mxu0
        %v1554 = vadd.f32 %v1188, %v1553
        %v1555 = vpop.f32.mrf.mxu0
        %1556 = vdwg.mxu0
        %v1557 = vsel %vm1248, %v1551, -inf
        %1558 = vmax.xlane.f32.xlu0 %v1557
        %v1559 = vpop.xlane.xlu0 %1558
        %v1560 = vsel %vm1248, %v1554, -inf
        %1561 = vmax.xlane.f32.xlu0 %v1560
        %v1562 = vpop.xlane.xlu0 %1561
        %v1563 = vsub.f32 %v1551, %v1559
        %v1564 = vsub.f32 %v1554, %v1562
        %v1565 = vmul.f32 %v1563, 1.442695
        %v1566 = vpow.pop %v1565
        %v1567 = vmul.f32 %v1564, 1.442695
        %v1568 = vpow.pop %v1567
        %v1569 = vsel %vm1248, %v1566, 0.0
        %1570 = vadd.xlane.f32.xlu0 %v1569
        %v1571 = vpop.xlane.xlu0 %1570
        %v1572 = vsel %vm1248, %v1568, 0.0
        %1573 = vadd.xlane.f32.xlu0 %v1572
        %v1574 = vpop.xlane.xlu0 %1573
        %v1575 = vrcp.pop %v1571
        %v1576 = vrcp.pop %v1574
        %v1577 = vmul.f32 %v1566, %v1575
        %v1578 = vmul.f32 %v1568, %v1576
        %v1579 = vpack.c.bf16 %v1578, %v1577
        %v1582 = vunpack.c.l.b16 %v1494
        %v1583 = vunpack.c.l.b16 %v1495
        %v1584 = vpack.c.b16 %v1583, %v1582
        %1585 = vrot.lane.b32.xlu0 %v1584, 112
        %v1586 = vpop.permute.xlu0 %1585
        %v1589 = vsel %vm1248, %v1579, 0
        %1591 = vmatprep.subr.bf16.mxu0 0
        %1592 = vmatpush1.bf16.msra.mxu0 0
        %1593 = vmatprep.subr.bf16.mxu0 0
        %1594 = vmatpush1.bf16.msra.mxu0 0
        %1595 = vmatprep.subr.bf16.mxu0 0
        %1596 = vmatpush1.bf16.msra.mxu0 0
        %1597 = vmatprep.subr.bf16.mxu0 0
        %1598 = vmatpush1.bf16.msra.mxu0 0
        %1599 = vmatprep.subr.bf16.mxu0 0
        %1600 = vmatpush1.bf16.msra.mxu0 0
        %1601 = vmatprep.subr.bf16.mxu0 0
        %1602 = vmatpush1.bf16.msra.mxu0 0
        %1603 = vmatprep.subr.bf16.mxu0 0
        %1604 = vmatpush1.bf16.msra.mxu0 0
        %1605 = vmatprep.subr.bf16.mxu0 0
        %1606 = vmatpush1.bf16.msra.mxu0 %v1586
        %1607 = vmatprep.subr.bf16.mxu0 0
        %1608 = vmatpush2.bf16.msra.mxu0 0
        %1609 = vmatprep.subr.bf16.mxu0 0
        %1610 = vmatpush2.bf16.msra.mxu0 0
        %1611 = vmatprep.subr.bf16.mxu0 0
        %1612 = vmatpush2.bf16.msra.mxu0 0
        %1613 = vmatprep.subr.bf16.mxu0 0
        %1614 = vmatpush2.bf16.msra.mxu0 0
        %1615 = vmatprep.subr.bf16.mxu0 0
        %1616 = vmatpush2.bf16.msra.mxu0 0
        %1617 = vmatprep.subr.bf16.mxu0 0
        %1618 = vmatpush2.bf16.msra.mxu0 0
        %1619 = vmatprep.subr.bf16.mxu0 0
        %1620 = vmatpush2.bf16.msra.mxu0 0
        %1621 = vmatprep.subr.bf16.mxu0 0
        %1622 = vmatpush2.bf16.msra.mxu0 0
        %1623 = vmatprep.mubr.bf16.mxu0 0
        %1624 = vmatmul.mubr.bf16.gmra.mxu0 %v1589
        %v1625 = vpop.f32.mrf.mxu0
        %v1626 = vadd.f32 0.0, %v1625
        %v1627 = vpop.f32.mrf.mxu0
        %v1628 = vpop.f32.mrf.mxu0
        %v1629 = vadd.f32 0.0, %v1628
        %v1630 = vpop.f32.mrf.mxu0
        %1631 = vdwg.mxu0
        %v1632 = vpack.c.bf16 %v1629, %v1626
        %v1634 = vunpack.c.l.b16 %v1632
        %v1635 = vunpack.c.h.b16 %v1632
        %v1636 = vpack.c.b16 %v1634, %v1634
        %v1637 = vpack.c.b16 %v1635, %v1635
        %1638 = vrot.lane.b32.xlu0 %v1636, 16
        %v1639 = vpop.permute.xlu0 %1638
        %1640 = vrot.lane.b32.xlu0 %v1637, 16
        %v1641 = vpop.permute.xlu0 %1640
        %vm1644 = vcmask 191616
        %1645 = vst.msk [vmem:[#allocation5] sm:$0xf] %vm1644, %v1639
        %1646 = vst.msk [vmem:[#allocation5 + $0x4] sm:$0xf] %vm1644, %v1641
        %v1647 = vld [vmem:[#allocation2] sm:$0xf]
        %v1648 = vld [vmem:[#allocation2 + $0x4] sm:$0xf]
        %v1649 = vld [vmem:[#allocation3] sm:$0xf]
        %v1650 = vld [vmem:[#allocation3 + $0x4] sm:$0xf]
        %v1651 = vld [vmem:[#allocation4] sm:$0xf]
        %v1652 = vld [vmem:[#allocation4 + $0x4] sm:$0xf]
        %v1655 = vunpack.c.l.b16 %v1647
        %v1656 = vunpack.c.l.b16 %v1648
        %v1657 = vpack.c.b16 %v1656, %v1655
        %1658 = vrot.lane.b32.xlu0 %v1657, 104
        %v1659 = vpop.permute.xlu0 %1658
        %v1662 = vunpack.c.l.b16 %v1649
        %v1663 = vunpack.c.l.b16 %v1650
        %v1664 = vpack.c.b16 %v1663, %v1662
        %1665 = vrot.lane.b32.xlu0 %v1664, 104
        %v1666 = vpop.permute.xlu0 %1665
        %v1668 = vsel %vm1200, %v1659, 0
        %v1671 = vsel %vm1200, %v1666, 0
        %1673 = vmatprep.subr.bf16.mxu0 0
        %1674 = vmatpush1.bf16.xpose.msra.mxu0 0
        %1675 = vmatprep.subr.bf16.mxu0 0
        %1676 = vmatpush1.bf16.xpose.msra.mxu0 0
        %1677 = vmatprep.subr.bf16.mxu0 0
        %1678 = vmatpush1.bf16.xpose.msra.mxu0 0
        %1679 = vmatprep.subr.bf16.mxu0 0
        %1680 = vmatpush1.bf16.xpose.msra.mxu0 0
        %1681 = vmatprep.subr.bf16.mxu0 0
        %1682 = vmatpush1.bf16.xpose.msra.mxu0 0
        %1683 = vmatprep.subr.bf16.mxu0 0
        %1684 = vmatpush1.bf16.xpose.msra.mxu0 0
        %1685 = vmatprep.subr.bf16.mxu0 0
        %1686 = vmatpush1.bf16.xpose.msra.mxu0 0
        %1687 = vmatprep.subr.bf16.mxu0 0
        %1688 = vmatpush1.bf16.xpose.msra.mxu0 %v1671
        %1689 = vmatprep.subr.bf16.mxu0 0
        %1690 = vmatpush2.bf16.xpose.msra.mxu0 0
        %1691 = vmatprep.subr.bf16.mxu0 0
        %1692 = vmatpush2.bf16.xpose.msra.mxu0 0
        %1693 = vmatprep.subr.bf16.mxu0 0
        %1694 = vmatpush2.bf16.xpose.msra.mxu0 0
        %1695 = vmatprep.subr.bf16.mxu0 0
        %1696 = vmatpush2.bf16.xpose.msra.mxu0 0
        %1697 = vmatprep.subr.bf16.mxu0 0
        %1698 = vmatpush2.bf16.xpose.msra.mxu0 0
        %1699 = vmatprep.subr.bf16.mxu0 0
        %1700 = vmatpush2.bf16.xpose.msra.mxu0 0
        %1701 = vmatprep.subr.bf16.mxu0 0
        %1702 = vmatpush2.bf16.xpose.msra.mxu0 0
        %1703 = vmatprep.subr.bf16.mxu0 0
        %1704 = vmatpush2.bf16.xpose.msra.mxu0 0
        %1705 = vmatprep.mubr.bf16.mxu0 0
        %1706 = vmatmul.mubr.bf16.gmra.mxu0 %v1668
        %v1707 = vpop.f32.mrf.mxu0
        %v1708 = vadd.f32 %v1188, %v1707
        %v1709 = vpop.f32.mrf.mxu0
        %v1710 = vpop.f32.mrf.mxu0
        %v1711 = vadd.f32 %v1188, %v1710
        %v1712 = vpop.f32.mrf.mxu0
        %1713 = vdwg.mxu0
        %v1714 = vsel %vm1248, %v1708, -inf
        %1715 = vmax.xlane.f32.xlu0 %v1714
        %v1716 = vpop.xlane.xlu0 %1715
        %v1717 = vsel %vm1248, %v1711, -inf
        %1718 = vmax.xlane.f32.xlu0 %v1717
        %v1719 = vpop.xlane.xlu0 %1718
        %v1720 = vsub.f32 %v1708, %v1716
        %v1721 = vsub.f32 %v1711, %v1719
        %v1722 = vmul.f32 %v1720, 1.442695
        %v1723 = vpow.pop %v1722
        %v1724 = vmul.f32 %v1721, 1.442695
        %v1725 = vpow.pop %v1724
        %v1726 = vsel %vm1248, %v1723, 0.0
        %1727 = vadd.xlane.f32.xlu0 %v1726
        %v1728 = vpop.xlane.xlu0 %1727
        %v1729 = vsel %vm1248, %v1725, 0.0
        %1730 = vadd.xlane.f32.xlu0 %v1729
        %v1731 = vpop.xlane.xlu0 %1730
        %v1732 = vrcp.pop %v1728
        %v1733 = vrcp.pop %v1731
        %v1734 = vmul.f32 %v1723, %v1732
        %v1735 = vmul.f32 %v1725, %v1733
        %v1736 = vpack.c.bf16 %v1735, %v1734
        %v1739 = vunpack.c.l.b16 %v1651
        %v1740 = vunpack.c.l.b16 %v1652
        %v1741 = vpack.c.b16 %v1740, %v1739
        %1742 = vrot.lane.b32.xlu0 %v1741, 104
        %v1743 = vpop.permute.xlu0 %1742
        %v1746 = vsel %vm1248, %v1736, 0
        %1748 = vmatprep.subr.bf16.mxu0 0
        %1749 = vmatpush1.bf16.msra.mxu0 0
        %1750 = vmatprep.subr.bf16.mxu0 0
        %1751 = vmatpush1.bf16.msra.mxu0 0
        %1752 = vmatprep.subr.bf16.mxu0 0
        %1753 = vmatpush1.bf16.msra.mxu0 0
        %1754 = vmatprep.subr.bf16.mxu0 0
        %1755 = vmatpush1.bf16.msra.mxu0 0
        %1756 = vmatprep.subr.bf16.mxu0 0
        %1757 = vmatpush1.bf16.msra.mxu0 0
        %1758 = vmatprep.subr.bf16.mxu0 0
        %1759 = vmatpush1.bf16.msra.mxu0 0
        %1760 = vmatprep.subr.bf16.mxu0 0
        %1761 = vmatpush1.bf16.msra.mxu0 0
        %1762 = vmatprep.subr.bf16.mxu0 0
        %1763 = vmatpush1.bf16.msra.mxu0 %v1743
        %1764 = vmatprep.subr.bf16.mxu0 0
        %1765 = vmatpush2.bf16.msra.mxu0 0
        %1766 = vmatprep.subr.bf16.mxu0 0
        %1767 = vmatpush2.bf16.msra.mxu0 0
        %1768 = vmatprep.subr.bf16.mxu0 0
        %1769 = vmatpush2.bf16.msra.mxu0 0
        %1770 = vmatprep.subr.bf16.mxu0 0
        %1771 = vmatpush2.bf16.msra.mxu0 0
        %1772 = vmatprep.subr.bf16.mxu0 0
        %1773 = vmatpush2.bf16.msra.mxu0 0
        %1774 = vmatprep.subr.bf16.mxu0 0
        %1775 = vmatpush2.bf16.msra.mxu0 0
        %1776 = vmatprep.subr.bf16.mxu0 0
        %1777 = vmatpush2.bf16.msra.mxu0 0
        %1778 = vmatprep.subr.bf16.mxu0 0
        %1779 = vmatpush2.bf16.msra.mxu0 0
        %1780 = vmatprep.mubr.bf16.mxu0 0
        %1781 = vmatmul.mubr.bf16.gmra.mxu0 %v1746
        %v1782 = vpop.f32.mrf.mxu0
        %v1783 = vadd.f32 0.0, %v1782
        %v1784 = vpop.f32.mrf.mxu0
        %v1785 = vpop.f32.mrf.mxu0
        %v1786 = vadd.f32 0.0, %v1785
        %v1787 = vpop.f32.mrf.mxu0
        %1788 = vdwg.mxu0
        %v1789 = vpack.c.bf16 %v1786, %v1783
        %v1791 = vunpack.c.l.b16 %v1789
        %v1792 = vunpack.c.h.b16 %v1789
        %v1793 = vpack.c.b16 %v1791, %v1791
        %v1794 = vpack.c.b16 %v1792, %v1792
        %1795 = vrot.lane.b32.xlu0 %v1793, 24
        %v1796 = vpop.permute.xlu0 %1795
        %1797 = vrot.lane.b32.xlu0 %v1794, 24
        %v1798 = vpop.permute.xlu0 %1797
        %vm1801 = vcmask 257216
        %1802 = vst.msk [vmem:[#allocation5] sm:$0xf] %vm1801, %v1796
        %1803 = vst.msk [vmem:[#allocation5 + $0x4] sm:$0xf] %vm1801, %v1798
        %v1804 = vld [vmem:[#allocation5] sm:$0xf]
        %v1805 = vld [vmem:[#allocation5 + $0x4] sm:$0xf]
        %v1806 = vld [vmem:[%s761] sm:$0xf]
        %v1807 = vld [vmem:[%s761 + $0x4] sm:$0xf]
        %v1808 = vld [vmem:[%s761 + $0x8] sm:$0xf]
        %v1809 = vld [vmem:[%s761 + $0xc] sm:$0xf]
        %v1810 = vld [vmem:[%s913] sm:$0x1]
        %v1812 = vlaneseq
        %v1813 = vshrl.u32 %v1812, 7
        %v1814 = vsub.s32 0, %v1813
        %v1815 = vrot.slane %v1810, %v1814
        %v1819 = vunpack.c.l.b16 %v1804
        %v1820 = vunpack.c.l.b16 %v1805
        %v1821 = vpack.c.b16 %v1820, %v1819
        %v1826 = vunpack.c.l.b16 %v1806
        %v1827 = vunpack.c.l.b16 %v1807
        %v1828 = vunpack.c.l.b16 %v1808
        %v1829 = vunpack.c.l.b16 %v1809
        %v1830 = vpack.c.b16 %v1827, %v1826
        %v1831 = vpack.c.b16 %v1829, %v1828
        %v1835 = vsel %vm974, %v1821, 0
        %1837 = vmatprep.subr.bf16.mxu0 0
        %1838 = vmatpush1.bf16.msra.mxu0 0
        %1839 = vmatprep.subr.bf16.mxu0 0
        %1840 = vmatpush1.bf16.msra.mxu0 0
        %1841 = vmatprep.subr.bf16.mxu0 0
        %1842 = vmatpush1.bf16.msra.mxu0 0
        %1843 = vmatprep.subr.bf16.mxu0 0
        %1844 = vmatpush1.bf16.msra.mxu0 0
        %1845 = vmatprep.subr.bf16.mxu0 0
        %1846 = vmatpush1.bf16.msra.mxu0 0
        %1847 = vmatprep.subr.bf16.mxu0 0
        %1848 = vmatpush1.bf16.msra.mxu0 0
        %1849 = vmatprep.subr.bf16.mxu0 0
        %1850 = vmatpush1.bf16.msra.mxu0 %v1831
        %1851 = vmatprep.subr.bf16.mxu0 0
        %1852 = vmatpush1.bf16.msra.mxu0 %v1830
        %1853 = vmatprep.subr.bf16.mxu0 0
        %1854 = vmatpush2.bf16.msra.mxu0 0
        %1855 = vmatprep.subr.bf16.mxu0 0
        %1856 = vmatpush2.bf16.msra.mxu0 0
        %1857 = vmatprep.subr.bf16.mxu0 0
        %1858 = vmatpush2.bf16.msra.mxu0 0
        %1859 = vmatprep.subr.bf16.mxu0 0
        %1860 = vmatpush2.bf16.msra.mxu0 0
        %1861 = vmatprep.subr.bf16.mxu0 0
        %1862 = vmatpush2.bf16.msra.mxu0 0
        %1863 = vmatprep.subr.bf16.mxu0 0
        %1864 = vmatpush2.bf16.msra.mxu0 0
        %1865 = vmatprep.subr.bf16.mxu0 0
        %1866 = vmatpush2.bf16.msra.mxu0 0
        %1867 = vmatprep.subr.bf16.mxu0 0
        %1868 = vmatpush2.bf16.msra.mxu0 0
        %1869 = vmatprep.mubr.bf16.mxu0 0
        %1870 = vmatmul.mubr.bf16.gmra.mxu0 %v1835
        %v1871 = vpop.f32.mrf.mxu0
        %v1872 = vadd.f32 %v1815, %v1871
        %v1873 = vpop.f32.mrf.mxu0
        %v1874 = vpop.f32.mrf.mxu0
        %v1875 = vadd.f32 %v1815, %v1874
        %v1876 = vpop.f32.mrf.mxu0
        %1877 = vdwg.mxu0
        %v1878 = vadd.f32 %v947, %v1872
        %v1879 = vadd.f32 %v948, %v1875
        %v1880 = vsel %vm974, %v1878, 0.0
        %1881 = vadd.xlane.f32.xlu0 %v1880
        %v1882 = vpop.xlane.xlu0 %1881
        %v1883 = vsel %vm974, %v1879, 0.0
        %1884 = vadd.xlane.f32.xlu0 %v1883
        %v1885 = vpop.xlane.xlu0 %1884
        %v1886 = vrcp.pop 32.0
        %v1887 = vmul.f32 %v1882, %v1886
        %v1888 = vmul.f32 %v1885, %v1886
        %v1889 = vsub.f32 %v1878, %v1887
        %v1890 = vsub.f32 %v1879, %v1888
        %v1891 = vmul.f32 %v1889, %v1889
        %v1892 = vmul.f32 %v1890, %v1890
        %v1893 = vsel %vm974, %v1891, 0.0
        %1894 = vadd.xlane.f32.xlu0 %v1893
        %v1895 = vpop.xlane.xlu0 %1894
        %v1896 = vsel %vm974, %v1892, 0.0
        %1897 = vadd.xlane.f32.xlu0 %v1896
        %v1898 = vpop.xlane.xlu0 %1897
        %v1899 = vmul.f32 %v1895, %v1886
        %v1900 = vmul.f32 %v1898, %v1886
        %v1901 = vadd.f32 %v1899, 1e-05
        %v1902 = vadd.f32 %v1900, 1e-05
        %v1903 = vrsqrt.pop %v1901
        %v1904 = vrsqrt.pop %v1902
        %v1905 = vmul.f32 %v1889, %v1903
        %v1906 = vmul.f32 %v1890, %v1904
        %v1907 = vld [vmem:[%s927] sm:$0x1]
        %v1909 = vlaneseq
        %v1910 = vshrl.u32 %v1909, 7
        %v1911 = vsub.s32 0, %v1910
        %v1912 = vrot.slane %v1907, %v1911
        %v1914 = vmul.f32 %v1905, %v1912
        %v1915 = vmul.f32 %v1906, %v1912
        %v1916 = vld [vmem:[%s930] sm:$0x1]
        %v1918 = vlaneseq
        %v1919 = vshrl.u32 %v1918, 7
        %v1920 = vsub.s32 0, %v1919
        %v1921 = vrot.slane %v1916, %v1920
        %v1923 = vadd.f32 %v1914, %v1921
        %v1924 = vadd.f32 %v1915, %v1921
        %v1925 = vpack.c.bf16 %v1924, %v1923
        %v1926 = vld [vmem:[%s770] sm:$0xf]
        %v1927 = vld [vmem:[%s770 + $0x4] sm:$0xf]
        %v1928 = vld [vmem:[%s770 + $0x8] sm:$0xf]
        %v1929 = vld [vmem:[%s770 + $0xc] sm:$0xf]
        %v1930 = vld [vmem:[%s916] sm:$0x1]
        %v1932 = vlaneseq
        %v1933 = vshrl.u32 %v1932, 7
        %v1934 = vsub.s32 0, %v1933
        %v1935 = vrot.slane %v1930, %v1934
        %v1941 = vunpack.c.l.b16 %v1926
        %v1942 = vunpack.c.l.b16 %v1927
        %v1943 = vunpack.c.l.b16 %v1928
        %v1944 = vunpack.c.l.b16 %v1929
        %v1945 = vpack.c.b16 %v1942, %v1941
        %v1946 = vpack.c.b16 %v1944, %v1943
        %v1950 = vsel %vm974, %v1925, 0
        %1952 = vmatprep.subr.bf16.mxu0 0
        %1953 = vmatpush1.bf16.msra.mxu0 0
        %1954 = vmatprep.subr.bf16.mxu0 0
        %1955 = vmatpush1.bf16.msra.mxu0 0
        %1956 = vmatprep.subr.bf16.mxu0 0
        %1957 = vmatpush1.bf16.msra.mxu0 0
        %1958 = vmatprep.subr.bf16.mxu0 0
        %1959 = vmatpush1.bf16.msra.mxu0 0
        %1960 = vmatprep.subr.bf16.mxu0 0
        %1961 = vmatpush1.bf16.msra.mxu0 0
        %1962 = vmatprep.subr.bf16.mxu0 0
        %1963 = vmatpush1.bf16.msra.mxu0 0
        %1964 = vmatprep.subr.bf16.mxu0 0
        %1965 = vmatpush1.bf16.msra.mxu0 %v1946
        %1966 = vmatprep.subr.bf16.mxu0 0
        %1967 = vmatpush1.bf16.msra.mxu0 %v1945
        %1968 = vmatprep.subr.bf16.mxu0 0
        %1969 = vmatpush2.bf16.msra.mxu0 0
        %1970 = vmatprep.subr.bf16.mxu0 0
        %1971 = vmatpush2.bf16.msra.mxu0 0
        %1972 = vmatprep.subr.bf16.mxu0 0
        %1973 = vmatpush2.bf16.msra.mxu0 0
        %1974 = vmatprep.subr.bf16.mxu0 0
        %1975 = vmatpush2.bf16.msra.mxu0 0
        %1976 = vmatprep.subr.bf16.mxu0 0
        %1977 = vmatpush2.bf16.msra.mxu0 0
        %1978 = vmatprep.subr.bf16.mxu0 0
        %1979 = vmatpush2.bf16.msra.mxu0 0
        %1980 = vmatprep.subr.bf16.mxu0 0
        %1981 = vmatpush2.bf16.msra.mxu0 0
        %1982 = vmatprep.subr.bf16.mxu0 0
        %1983 = vmatpush2.bf16.msra.mxu0 0
        %1984 = vmatprep.mubr.bf16.mxu0 0
        %1985 = vmatmul.mubr.bf16.gmra.mxu0 %v1950
        %v1986 = vpop.f32.mrf.mxu0
        %v1987 = vadd.f32 %v1935, %v1986
        %v1988 = vpop.f32.mrf.mxu0
        %v1989 = vpop.f32.mrf.mxu0
        %v1990 = vadd.f32 %v1935, %v1989
        %v1991 = vpop.f32.mrf.mxu0
        %1992 = vdwg.mxu0
        %v1993 = vmax.f32 %v1987, 0.0
        %v1994 = vmax.f32 %v1990, 0.0
        %v1995 = vpack.c.bf16 %v1994, %v1993
        %v1996 = vld [vmem:[%s921] sm:$0xf]
        %v1997 = vld [vmem:[%s921 + $0x4] sm:$0xf]
        %v1998 = vld [vmem:[%s921 + $0x8] sm:$0xf]
        %v1999 = vld [vmem:[%s921 + $0xc] sm:$0xf]
        %v2000 = vld [vmem:[%s921 + $0x10] sm:$0xf]
        %v2001 = vld [vmem:[%s921 + $0x14] sm:$0xf]
        %v2002 = vld [vmem:[%s921 + $0x18] sm:$0xf]
        %v2003 = vld [vmem:[%s921 + $0x1c] sm:$0xf]
        %v2004 = vld [vmem:[%s924] sm:$0x1]
        %v2006 = vlaneseq
        %v2007 = vshrl.u32 %v2006, 7
        %v2008 = vsub.s32 0, %v2007
        %v2009 = vrot.slane %v2004, %v2008
        %v2019 = vunpack.c.l.b16 %v1996
        %v2020 = vunpack.c.l.b16 %v1997
        %v2021 = vunpack.c.l.b16 %v1998
        %v2022 = vunpack.c.l.b16 %v1999
        %v2023 = vunpack.c.l.b16 %v2000
        %v2024 = vunpack.c.l.b16 %v2001
        %v2025 = vunpack.c.l.b16 %v2002
        %v2026 = vunpack.c.l.b16 %v2003
        %v2027 = vpack.c.b16 %v2020, %v2019
        %v2028 = vpack.c.b16 %v2022, %v2021
        %v2029 = vpack.c.b16 %v2024, %v2023
        %v2030 = vpack.c.b16 %v2026, %v2025
        %vm2035 = vcmask 523264
        %v2037 = vsel %vm2035, %v1995, 0
        %2039 = vmatprep.subr.bf16.mxu0 0
        %2040 = vmatpush1.bf16.msra.mxu0 0
        %2041 = vmatprep.subr.bf16.mxu0 0
        %2042 = vmatpush1.bf16.msra.mxu0 0
        %2043 = vmatprep.subr.bf16.mxu0 0
        %2044 = vmatpush1.bf16.msra.mxu0 0
        %2045 = vmatprep.subr.bf16.mxu0 0
        %2046 = vmatpush1.bf16.msra.mxu0 0
        %2047 = vmatprep.subr.bf16.mxu0 0
        %2048 = vmatpush1.bf16.msra.mxu0 %v2030
        %2049 = vmatprep.subr.bf16.mxu0 0
        %2050 = vmatpush1.bf16.msra.mxu0 %v2029
        %2051 = vmatprep.subr.bf16.mxu0 0
        %2052 = vmatpush1.bf16.msra.mxu0 %v2028
        %2053 = vmatprep.subr.bf16.mxu0 0
        %2054 = vmatpush1.bf16.msra.mxu0 %v2027
        %2055 = vmatprep.subr.bf16.mxu0 0
        %2056 = vmatpush2.bf16.msra.mxu0 0
        %2057 = vmatprep.subr.bf16.mxu0 0
        %2058 = vmatpush2.bf16.msra.mxu0 0
        %2059 = vmatprep.subr.bf16.mxu0 0
        %2060 = vmatpush2.bf16.msra.mxu0 0
        %2061 = vmatprep.subr.bf16.mxu0 0
        %2062 = vmatpush2.bf16.msra.mxu0 0
        %2063 = vmatprep.subr.bf16.mxu0 0
        %2064 = vmatpush2.bf16.msra.mxu0 0
        %2065 = vmatprep.subr.bf16.mxu0 0
        %2066 = vmatpush2.bf16.msra.mxu0 0
        %2067 = vmatprep.subr.bf16.mxu0 0
        %2068 = vmatpush2.bf16.msra.mxu0 0
        %2069 = vmatprep.subr.bf16.mxu0 0
        %2070 = vmatpush2.bf16.msra.mxu0 0
        %2071 = vmatprep.mubr.bf16.mxu0 0
        %2072 = vmatmul.mubr.bf16.gmra.mxu0 %v2037
        %v2073 = vpop.f32.mrf.mxu0
        %v2074 = vadd.f32 %v2009, %v2073
        %v2075 = vpop.f32.mrf.mxu0
        %v2076 = vpop.f32.mrf.mxu0
        %v2077 = vadd.f32 %v2009, %v2076
        %v2078 = vpop.f32.mrf.mxu0
        %2079 = vdwg.mxu0
        %v2080 = vadd.f32 %v1923, %v2074
        %v2081 = vadd.f32 %v1924, %v2077
        %v2082 = vsel %vm974, %v2080, 0.0
        %2083 = vadd.xlane.f32.xlu0 %v2082
        %v2084 = vpop.xlane.xlu0 %2083
        %v2085 = vsel %vm974, %v2081, 0.0
        %2086 = vadd.xlane.f32.xlu0 %v2085
        %v2087 = vpop.xlane.xlu0 %2086
        %v2088 = vmul.f32 %v2084, %v1886
        %v2089 = vmul.f32 %v2087, %v1886
        %v2090 = vsub.f32 %v2080, %v2088
        %v2091 = vsub.f32 %v2081, %v2089
        %v2092 = vmul.f32 %v2090, %v2090
        %v2093 = vmul.f32 %v2091, %v2091
        %v2094 = vsel %vm974, %v2092, 0.0
        %2095 = vadd.xlane.f32.xlu0 %v2094
        %v2096 = vpop.xlane.xlu0 %2095
        %v2097 = vsel %vm974, %v2093, 0.0
        %2098 = vadd.xlane.f32.xlu0 %v2097
        %v2099 = vpop.xlane.xlu0 %2098
        %v2100 = vmul.f32 %v2096, %v1886
        %v2101 = vmul.f32 %v2099, %v1886
        %v2102 = vadd.f32 %v2100, 1e-05
        %v2103 = vadd.f32 %v2101, 1e-05
        %v2104 = vrsqrt.pop %v2102
        %v2105 = vrsqrt.pop %v2103
        %v2106 = vmul.f32 %v2090, %v2104
        %v2107 = vmul.f32 %v2091, %v2105
        %v2108 = vld [vmem:[%s933] sm:$0x1]
        %v2110 = vlaneseq
        %v2111 = vshrl.u32 %v2110, 7
        %v2112 = vsub.s32 0, %v2111
        %v2113 = vrot.slane %v2108, %v2112
        %v2115 = vmul.f32 %v2106, %v2113
        %v2116 = vmul.f32 %v2107, %v2113
        %v2117 = vld [vmem:[%s936] sm:$0x1]
        %v2119 = vlaneseq
        %v2120 = vshrl.u32 %v2119, 7
        %v2121 = vsub.s32 0, %v2120
        %v2122 = vrot.slane %v2117, %v2121
        %v2124 = vadd.f32 %v2115, %v2122
        %v2125 = vadd.f32 %v2116, %v2122
        %2126 = vst.msk [vmem:[%s886] sm:$0xff] %vm974, %v2124
        %2127 = vst.msk [vmem:[%s886 + $0x8] sm:$0xff] %vm974, %v2125
        %s2128 = sand.u32 %s529, 1
        %s2129 = scalar_lea.sflag [#allocation8], %s2128
        %s2130 = sand.u32 %s529, 1
        %s2131 = smul.addr %s2130, 16
        %s2132 = scalar_lea.vmem [#allocation14], %s2131
        // Predicated region
        $region113: #{tpu_custom_call.1} parent=91 // pred_check
          %p2133 = pneg %p539
        $region114: #{tpu_custom_call.1} parent=91 // pred_check_branch
          %2135 = sbr.rel (%p2133) target = $region116
        $region115: #{tpu_custom_call.1} parent=91 // pred_region
          %s2137 = ssub.s32 256, 256
          %2138 = vsyncadd %s2129, %s2137
          %s2139 = smul.addr %s45, 2
          %s2140 = smul.addr %s2139, 128
          %s2141 = scalar_lea.hbm %s18, %s2140
          %s2142 = sshll.u32 %s2132, 4
          %s2143 = int_to_ptr.vmem [resolvable:$true] %s2142
          %2148 = dma.vmem_to_hbm [thread:$0]  %s2143, 256, %s2141, %s2129, 128, 128, 8
        $region116: #{tpu_custom_call.1} parent=91 // pred_fallthru
          _
      $region92: #{tpu_custom_call.1} parent=5 // pred_fallthru
        _
      %p2149 = scmp.le.s32.totalorder 2, %s36
      // Predicated region
      $region117: #{tpu_custom_call.1} parent=5 // pred_check
        %p2150 = pneg %p2149
      $region118: #{tpu_custom_call.1} parent=5 // pred_check_branch
        %2152 = sbr.rel (%p2150) target = $region120
      $region119: #{tpu_custom_call.1} parent=5 // pred_region
        %s2153 = ssub.s32 %s36, 2
        // Predicated region
        $region121: #{tpu_custom_call.1} parent=119 // pred_check
          %p2154 = pneg %p545
        $region122: #{tpu_custom_call.1} parent=119 // pred_check_branch
          %2156 = sbr.rel (%p2154) target = $region124
        $region123: #{tpu_custom_call.1} parent=119 // pred_region
          %s2157 = sand.u32 %s530, 1
          %s2158 = scalar_lea.sflag [#allocation8], %s2157
          %s2159 = sand.u32 %s530, 1
          %s2160 = smul.addr %s2159, 16
          %s2161 = scalar_lea.vmem [#allocation14], %s2160
          %2162 = dma.done %s2158, 256
        $region124: #{tpu_custom_call.1} parent=119 // pred_fallthru
          _
      $region120: #{tpu_custom_call.1} parent=5 // pred_fallthru
        _
    $region6: #{tpu_custom_call.1} parent=1 // loop_footer
      %s40 = sadd.s32 1, %s36
    $region7: #{tpu_custom_call.1} parent=1 // loop_footer_branch
      %35 = sbr.rel target = $region3
    $region8: #{tpu_custom_call.1} parent=1 // loop_exit
      _
    %2163 = vsyncpa [#allocation7], 1
    %s2164 = scalar_lea.sflag [#allocation7], 1
    %2165 = vsyncpa %s2164, 1
    %2166 = vsyncpa [#allocation10], 1
    %s2167 = scalar_lea.sflag [#allocation10], 1
    %2168 = vsyncpa %s2167, 1
    %2169 = vsyncpa [#allocation13], 1
    %s2170 = scalar_lea.sflag [#allocation13], 1
    %2171 = vsyncpa %s2170, 1
    %2172 = vsyncpa [#allocation8], 1
    %s2173 = scalar_lea.sflag [#allocation8], 1
    %2174 = vsyncpa %s2173, 1

</llo_original>
